<compile_context>
chip_gen: v5e
topology: v5e:2x2
jax: 0.10.0
libtpu: 0.0.40
codegen_flags: <defaults>
</compile_context>

<pallas_src>
import math

import jax
import jax.numpy as jnp
from jax.experimental import pallas as pl
from jax.experimental.pallas import tpu as pltpu


def _round_up(x, m):
    return (x + m - 1) // m * m


def _tile_budget():
    """Generation-aware (row-tile cap, scoped-VMEM limit)."""
    try:
        vmem_bytes = pltpu.get_tpu_info().vmem_capacity_bytes
    except Exception:
        return 8192, 48 * 1024 * 1024
    if vmem_bytes <= 64 * 1024 * 1024:          # v7x-class: 64 MiB physical VMEM
        return 8192, 44 * 1024 * 1024
    return 16384, 80 * 1024 * 1024              # v5e / v6e: 128 MiB physical VMEM


def _mlp_kernel(x_ref, w1_ref, b1_ref, w2_ref, b2_ref, w3_ref, b3_ref, o_ref):
    # fc1: bf16 MXU matmul, f32 accumulate; bias + ReLU on the VPU in f32.
    h1 = jnp.dot(x_ref[...], w1_ref[...], preferred_element_type=jnp.float32)
    h1 = jnp.maximum(h1 + b1_ref[...], 0.0)
    # dropout(p=0.001) is identity in eval mode.
    # TODO(synk): train-mode dropout (pltpu.prng_random_bits mask) not emitted.
    # fc2: bf16 MXU matmul, f32 accumulate; bias + ReLU in f32.
    h2 = jnp.dot(h1.astype(jnp.bfloat16), w2_ref[...],
                 preferred_element_type=jnp.float32)
    h2 = jnp.maximum(h2 + b2_ref[...], 0.0)
    # fc3 (output_dim == 1): VPU multiply + lane reduction instead of an MXU
    # matmul with N=1; emit lane-dense (TM//128, 128) output.
    prod = h2 * w3_ref[...]                              # (TM, emb) f32
    nb = o_ref.shape[0]                                  # TM // 128 (static)
    prod = prod.reshape(nb, 128, prod.shape[-1])         # tile-aligned row split
    out = jnp.sum(prod, axis=-1) + b3_ref[...]           # (TM//128, 128) + (1,1)
    o_ref[...] = out.astype(o_ref.dtype)


def mlp_pallas(x, params):
    """x: [..., input_dim] float32. Returns x.shape[:-1] (fc3 output squeezed)."""
    w1, b1, w2, b2, w3, b3 = params
    assert w3.shape[0] == 1, "kernel assumes output_dim == 1 (module squeezes it)"
    lead_shape = x.shape[:-1]
    input_dim = x.shape[-1]

    x2d = x.reshape(-1, input_dim)
    m = x2d.shape[0]

    tm_max, vmem_limit = _tile_budget()
    # Row tile must be a multiple of 1024 so the lane-dense output block
    # (TM//128, 128) keeps its sublane dim a multiple of 8.
    tm = min(tm_max, _round_up(max(m, 1), 1024))
    m_pad = _round_up(m, tm)
    if m_pad != m:
        x2d = jnp.pad(x2d, ((0, m_pad - m), (0, 0)))

    # PyTorch Linear is y = x @ W.T + b -> pre-transpose weights.
    # Streamed / MXU operands in bf16 (halves HBM bytes for x); in production
    # the producer of x would emit bf16 so this cast fuses upstream.
    x_bf = x2d.astype(jnp.bfloat16)
    w1t = w1.T.astype(jnp.bfloat16)                   # [input_dim, ff]
    w2t = w2.T.astype(jnp.bfloat16)                   # [ff, emb]
    w3r = w3.astype(jnp.float32)                      # [1, emb]  (VPU operand)
    b1r = b1.reshape(1, -1).astype(jnp.float32)
    b2r = b2.reshape(1, -1).astype(jnp.float32)
    b3r = b3.reshape(1, 1).astype(jnp.float32)

    ff = w1t.shape[1]
    emb = w2t.shape[1]
    grid = (m_pad // tm,)

    # Weights/biases: full-array blocks with constant index_map -> DMA'd once,
    # resident in VMEM across the whole grid.
    def resident(shape):
        return pl.BlockSpec(shape, lambda i: (0, 0))

    out = pl.pallas_call(
        _mlp_kernel,
        out_shape=jax.ShapeDtypeStruct((m_pad // 128, 128), jnp.float32),
        grid_spec=pltpu.PrefetchScalarGridSpec(
            num_scalar_prefetch=0,
            grid=grid,
            in_specs=[
                pl.BlockSpec((tm, input_dim), lambda i: (i, 0)),   # streamed x
                resident((input_dim, ff)),                         # w1^T
                resident((1, ff)),                                 # b1
                resident((ff, emb)),                               # w2^T
                resident((1, emb)),                                # b2
                resident((1, emb)),                                # w3 row
                resident((1, 1)),                                  # b3
            ],
            out_specs=pl.BlockSpec((tm // 128, 128), lambda i: (i, 0)),
        ),
        compiler_params=pltpu.CompilerParams(
            dimension_semantics=("parallel",),     # megacore sharding on v7x
            vmem_limit_bytes=vmem_limit,
        ),
    )(x_bf, w1t, b1r, w2t, b2r, w3r, b3r)

    # .squeeze(-1) semantics of the PyTorch module (output_dim == 1).
    out_flat = out.reshape(m_pad)[:m]
    return out_flat.reshape(lead_shape)


def init_mlp_params(key, input_dim=128, feed_forward_dim=64, embedding_dim=64,
                    output_dim=1):
    """Deterministic init matching the module: U(-stdv, stdv), stdv=1/sqrt(size(-1))."""
    ks = jax.random.split(key, 6)

    def uni(k, shape):
        stdv = 1.0 / math.sqrt(shape[-1])
        return jax.random.uniform(k, shape, jnp.float32, -stdv, stdv)

    w1 = uni(ks[0], (feed_forward_dim, input_dim))
    b1 = uni(ks[1], (feed_forward_dim,))
    w2 = uni(ks[2], (embedding_dim, feed_forward_dim))
    b2 = uni(ks[3], (embedding_dim,))
    w3 = uni(ks[4], (output_dim, embedding_dim))
    b3 = uni(ks[5], (output_dim,))
    return (w1, b1, w2, b2, w3, b3)


def mlp_reference(x, params):
    w1, b1, w2, b2, w3, b3 = params
    h1 = jnp.maximum(x @ w1.T + b1, 0.0)
    h2 = jnp.maximum(h1 @ w2.T + b2, 0.0)
    return (h2 @ w3.T + b3).squeeze(-1)


if __name__ == "__main__":
    key = jax.random.PRNGKey(0)
    k_x, k_p = jax.random.split(key)

    input_dim, ff_dim, emb_dim, out_dim = 128, 64, 64, 1
    batch, seq = 2, 8

    x = jax.random.normal(k_x, (batch, seq, input_dim), dtype=jnp.float32)
    params = init_mlp_params(k_p, input_dim, ff_dim, emb_dim, out_dim)

    out = jax.jit(mlp_pallas)(x, params)
    out = jax.block_until_ready(out)

    ref = mlp_reference(x, params)
    assert out.shape == (batch, seq), out.shape
    # bf16 matmul operands -> relaxed tolerance vs the pure-f32 reference.
    assert jnp.allclose(out, ref, atol=3e-2, rtol=3e-2), "mismatch vs reference"

    print("KERNEL_OK")
</pallas_src>

<mosaic_0001>
module attributes {stable_mosaic.version = 11 : i64} {
  func.func @_mlp_kernel(%arg0: i32, %arg1: memref<1024x128xbf16, #tpu.memory_space<vmem>>, %arg2: memref<128x64xbf16, #tpu.memory_space<vmem>>, %arg3: memref<1x64xf32, #tpu.memory_space<vmem>>, %arg4: memref<64x64xbf16, #tpu.memory_space<vmem>>, %arg5: memref<1x64xf32, #tpu.memory_space<vmem>>, %arg6: memref<1x64xf32, #tpu.memory_space<vmem>>, %arg7: memref<1x1xf32, #tpu.memory_space<vmem>>, %arg8: memref<8x128xf32, #tpu.memory_space<vmem>>) attributes {dimension_semantics = [#tpu.dimension_semantics<parallel>], iteration_bounds = array<i64: 1>, scalar_prefetch = 0 : i64, scratch_operands = 0 : i64, tpu.core_type = #tpu.core_type<tc>, window_params = [{transform_indices = @transform_0, window_bounds = array<i64: 1024, 128>}, {pipeline_mode = #tpu.pipeline_mode<synchronous>, transform_indices = @transform_1, window_bounds = array<i64: 128, 64>}, {pipeline_mode = #tpu.pipeline_mode<synchronous>, transform_indices = @transform_2, window_bounds = array<i64: 1, 64>}, {pipeline_mode = #tpu.pipeline_mode<synchronous>, transform_indices = @transform_3, window_bounds = array<i64: 64, 64>}, {pipeline_mode = #tpu.pipeline_mode<synchronous>, transform_indices = @transform_4, window_bounds = array<i64: 1, 64>}, {pipeline_mode = #tpu.pipeline_mode<synchronous>, transform_indices = @transform_5, window_bounds = array<i64: 1, 64>}, {pipeline_mode = #tpu.pipeline_mode<synchronous>, transform_indices = @transform_6, window_bounds = array<i64: 1, 1>}, {transform_indices = @transform_7, window_bounds = array<i64: 8, 128>}]} {
    %c0 = arith.constant 0 : index
    %c0_0 = arith.constant 0 : index
    %0 = vector.load %arg1[%c0, %c0_0] : memref<1024x128xbf16, #tpu.memory_space<vmem>>, vector<1024x128xbf16>
    %c0_1 = arith.constant 0 : index
    %c0_2 = arith.constant 0 : index
    %1 = vector.load %arg2[%c0_1, %c0_2] : memref<128x64xbf16, #tpu.memory_space<vmem>>, vector<128x64xbf16>
    %cst = arith.constant dense<0.000000e+00> : vector<1024x64xf32>
    %2 = tpu.matmul %0, %1, %cst {dimension_numbers = #tpu.dot_dimension_numbers<[1], [0], [0], [1], [0, 0, 1, 1], [], []>} : vector<1024x128xbf16>, vector<128x64xbf16>, vector<1024x64xf32> -> vector<1024x64xf32>
    %c0_3 = arith.constant 0 : index
    %c0_4 = arith.constant 0 : index
    %3 = vector.load %arg3[%c0_3, %c0_4] : memref<1x64xf32, #tpu.memory_space<vmem>>, vector<1x64xf32>
    %4 = vector.broadcast %3 : vector<1x64xf32> to vector<1024x64xf32>
    %5 = arith.addf %2, %4 : vector<1024x64xf32>
    %cst_5 = arith.constant 0.000000e+00 : f32
    %6 = vector.broadcast %cst_5 : f32 to vector<1024x64xf32>
    %7 = arith.maximumf %5, %6 : vector<1024x64xf32>
    %8 = arith.truncf %7 : vector<1024x64xf32> to vector<1024x64xbf16>
    %c0_6 = arith.constant 0 : index
    %c0_7 = arith.constant 0 : index
    %9 = vector.load %arg4[%c0_6, %c0_7] : memref<64x64xbf16, #tpu.memory_space<vmem>>, vector<64x64xbf16>
    %cst_8 = arith.constant dense<0.000000e+00> : vector<1024x64xf32>
    %10 = tpu.matmul %8, %9, %cst_8 {dimension_numbers = #tpu.dot_dimension_numbers<[1], [0], [0], [1], [0, 0, 1, 1], [], []>} : vector<1024x64xbf16>, vector<64x64xbf16>, vector<1024x64xf32> -> vector<1024x64xf32>
    %c0_9 = arith.constant 0 : index
    %c0_10 = arith.constant 0 : index
    %11 = vector.load %arg5[%c0_9, %c0_10] : memref<1x64xf32, #tpu.memory_space<vmem>>, vector<1x64xf32>
    %12 = vector.broadcast %11 : vector<1x64xf32> to vector<1024x64xf32>
    %13 = arith.addf %10, %12 : vector<1024x64xf32>
    %cst_11 = arith.constant 0.000000e+00 : f32
    %14 = vector.broadcast %cst_11 : f32 to vector<1024x64xf32>
    %15 = arith.maximumf %13, %14 : vector<1024x64xf32>
    %c0_12 = arith.constant 0 : index
    %c0_13 = arith.constant 0 : index
    %16 = vector.load %arg6[%c0_12, %c0_13] : memref<1x64xf32, #tpu.memory_space<vmem>>, vector<1x64xf32>
    %17 = vector.broadcast %16 : vector<1x64xf32> to vector<1024x64xf32>
    %18 = arith.mulf %15, %17 : vector<1024x64xf32>
    %19 = vector.shape_cast %18 : vector<1024x64xf32> to vector<8x128x64xf32>
    %cst_14 = arith.constant dense<0.000000e+00> : vector<8x128xf32>
    %20 = vector.multi_reduction <add>, %19, %cst_14 [2] : vector<8x128x64xf32> to vector<8x128xf32>
    %c0_15 = arith.constant 0 : index
    %c0_16 = arith.constant 0 : index
    %21 = vector.load %arg7[%c0_15, %c0_16] : memref<1x1xf32, #tpu.memory_space<vmem>>, vector<1x1xf32>
    %22 = vector.broadcast %21 : vector<1x1xf32> to vector<8x128xf32>
    %23 = arith.addf %20, %22 : vector<8x128xf32>
    %c0_17 = arith.constant 0 : index
    %c0_18 = arith.constant 0 : index
    %24 = vector.load %arg8[%c0_17, %c0_18] : memref<8x128xf32, #tpu.memory_space<vmem>>, vector<8x128xf32>
    tpu.vector_store %arg8[%c0_17, %c0_18], %23 {strides = array<i32>} : memref<8x128xf32, #tpu.memory_space<vmem>>, vector<8x128xf32>,
    return
  }
  func.func @transform_0(%arg0: i32) -> (i32, i32) {
    %c0_i32 = arith.constant 0 : i32
    %c0_i32_0 = arith.constant 0 : i32
    return %arg0, %c0_i32 : i32, i32
  }
  func.func @transform_1(%arg0: i32) -> (i32, i32) {
    %c0_i32 = arith.constant 0 : i32
    %c0_i32_0 = arith.constant 0 : i32
    %c0_i32_1 = arith.constant 0 : i32
    return %c0_i32, %c0_i32_0 : i32, i32
  }
  func.func @transform_2(%arg0: i32) -> (i32, i32) {
    %c0_i32 = arith.constant 0 : i32
    %c0_i32_0 = arith.constant 0 : i32
    %c0_i32_1 = arith.constant 0 : i32
    return %c0_i32, %c0_i32_0 : i32, i32
  }
  func.func @transform_3(%arg0: i32) -> (i32, i32) {
    %c0_i32 = arith.constant 0 : i32
    %c0_i32_0 = arith.constant 0 : i32
    %c0_i32_1 = arith.constant 0 : i32
    return %c0_i32, %c0_i32_0 : i32, i32
  }
  func.func @transform_4(%arg0: i32) -> (i32, i32) {
    %c0_i32 = arith.constant 0 : i32
    %c0_i32_0 = arith.constant 0 : i32
    %c0_i32_1 = arith.constant 0 : i32
    return %c0_i32, %c0_i32_0 : i32, i32
  }
  func.func @transform_5(%arg0: i32) -> (i32, i32) {
    %c0_i32 = arith.constant 0 : i32
    %c0_i32_0 = arith.constant 0 : i32
    %c0_i32_1 = arith.constant 0 : i32
    return %c0_i32, %c0_i32_0 : i32, i32
  }
  func.func @transform_6(%arg0: i32) -> (i32, i32) {
    %c0_i32 = arith.constant 0 : i32
    %c0_i32_0 = arith.constant 0 : i32
    %c0_i32_1 = arith.constant 0 : i32
    return %c0_i32, %c0_i32_0 : i32, i32
  }
  func.func @transform_7(%arg0: i32) -> (i32, i32) {
    %c0_i32 = arith.constant 0 : i32
    %c0_i32_0 = arith.constant 0 : i32
    return %arg0, %c0_i32 : i32, i32
  }
}

</mosaic_0001>

<llo_original>
// kernel: mlp_pallas.1
$region0: #{mlp_pallas.1}
  #allocation0 [shape = 'u32[]', space=smem, size = 0x4, offset = 0x4, fixed_abs, tag = 'smem constant byte address 0x4 - core index']
  #allocation1 [shape = 'u32[72,128]{1,0:T(1,128)}', space=vmem, size = 0x9000, scoped, tag = 'internal scratch']
  #allocation2 [shape = 'f32[1,1]{1,0:T(1,128)S(1)}', space=vmem, size = 0x200, scoped, tag = 'scoped memory for mlp_pallas.1']
  %s0 = inlined_call_operand.vmem [shape: bf16[1024,128], index: 0, kind: input, shape index: {}]
  %s1 = inlined_call_operand.vmem [shape: bf16[128,64], index: 1, kind: input, shape index: {}]
  %s2 = inlined_call_operand.vmem [shape: f32[1,64], index: 2, kind: input, shape index: {}]
  %s3 = inlined_call_operand.vmem [shape: bf16[64,64], index: 3, kind: input, shape index: {}]
  %s4 = inlined_call_operand.vmem [shape: f32[1,64], index: 4, kind: input, shape index: {}]
  %s5 = inlined_call_operand.vmem [shape: f32[1,64], index: 5, kind: input, shape index: {}]
  %s6 = inlined_call_operand.<no memory space> [shape: f32[1,1], index: 6, kind: input, shape index: {}]
  %s7 = inlined_call_operand.vmem [shape: f32[8,128], index: 7, kind: output, shape index: {}]
  %s8 = sld [smem:[#allocation0]]
  $region38: #{mlp_pallas.1} parent=0
    _
  %s10 = ssub.s32 1, %s8
  %s11 = scalar_select 0, %s10, %s8
  %v12 = vstv %s6
  %13 = vst [vmem:[#allocation2] sm:$0x1] %v12
  // Predicated region
  $region2: #{mlp_pallas.1} parent=0 // pred_check
    _
  $region3: #{mlp_pallas.1} parent=0 // pred_check_branch
    %15 = sbr.rel (0) target = $region5
  $region4: #{mlp_pallas.1} parent=0 // pred_region
    _
  $region5: #{mlp_pallas.1} parent=0 // pred_fallthru
    _
  // Predicated region
  $region6: #{mlp_pallas.1} parent=0 // pred_check
    _
  $region7: #{mlp_pallas.1} parent=0 // pred_check_branch
    %17 = sbr.rel (0) target = $region9
  $region8: #{mlp_pallas.1} parent=0 // pred_region
    _
  $region9: #{mlp_pallas.1} parent=0 // pred_fallthru
    _
  // Predicated region
  $region10: #{mlp_pallas.1} parent=0 // pred_check
    _
  $region11: #{mlp_pallas.1} parent=0 // pred_check_branch
    %19 = sbr.rel (0) target = $region13
  $region12: #{mlp_pallas.1} parent=0 // pred_region
    _
  $region13: #{mlp_pallas.1} parent=0 // pred_fallthru
    _
  // Predicated region
  $region14: #{mlp_pallas.1} parent=0 // pred_check
    _
  $region15: #{mlp_pallas.1} parent=0 // pred_check_branch
    %21 = sbr.rel (0) target = $region17
  $region16: #{mlp_pallas.1} parent=0 // pred_region
    _
  $region17: #{mlp_pallas.1} parent=0 // pred_fallthru
    _
  // Predicated region
  $region18: #{mlp_pallas.1} parent=0 // pred_check
    _
  $region19: #{mlp_pallas.1} parent=0 // pred_check_branch
    %23 = sbr.rel (0) target = $region21
  $region20: #{mlp_pallas.1} parent=0 // pred_region
    _
  $region21: #{mlp_pallas.1} parent=0 // pred_fallthru
    _
  // Predicated region
  $region22: #{mlp_pallas.1} parent=0 // pred_check
    _
  $region23: #{mlp_pallas.1} parent=0 // pred_check_branch
    %25 = sbr.rel (0) target = $region25
  $region24: #{mlp_pallas.1} parent=0 // pred_region
    _
  $region25: #{mlp_pallas.1} parent=0 // pred_fallthru
    _
  // Predicated region
  $region26: #{mlp_pallas.1} parent=0 // pred_check
    _
  $region27: #{mlp_pallas.1} parent=0 // pred_check_branch
    %27 = sbr.rel (0) target = $region29
  $region28: #{mlp_pallas.1} parent=0 // pred_region
    _
  $region29: #{mlp_pallas.1} parent=0 // pred_fallthru
    _
  %v29 = vld [vmem:[%s0] sm:$0xf]
  %v30 = vld [vmem:[%s0 + $0x4] sm:$0xf]
  %v31 = vld [vmem:[%s0 + $0x8] sm:$0xf]
  %v32 = vld [vmem:[%s0 + $0xc] sm:$0xf]
  %v33 = vld [vmem:[%s0 + $0x10] sm:$0xf]
  %v34 = vld [vmem:[%s0 + $0x14] sm:$0xf]
  %v35 = vld [vmem:[%s0 + $0x18] sm:$0xf]
  %v36 = vld [vmem:[%s0 + $0x1c] sm:$0xf]
  %v37 = vld [vmem:[%s0 + $0x20] sm:$0xf]
  %v38 = vld [vmem:[%s0 + $0x24] sm:$0xf]
  %v39 = vld [vmem:[%s0 + $0x28] sm:$0xf]
  %v40 = vld [vmem:[%s0 + $0x2c] sm:$0xf]
  %v41 = vld [vmem:[%s0 + $0x30] sm:$0xf]
  %v42 = vld [vmem:[%s0 + $0x34] sm:$0xf]
  %v43 = vld [vmem:[%s0 + $0x38] sm:$0xf]
  %v44 = vld [vmem:[%s0 + $0x3c] sm:$0xf]
  %v45 = vld [vmem:[%s0 + $0x40] sm:$0xf]
  %v46 = vld [vmem:[%s0 + $0x44] sm:$0xf]
  %v47 = vld [vmem:[%s0 + $0x48] sm:$0xf]
  %v48 = vld [vmem:[%s0 + $0x4c] sm:$0xf]
  %v49 = vld [vmem:[%s0 + $0x50] sm:$0xf]
  %v50 = vld [vmem:[%s0 + $0x54] sm:$0xf]
  %v51 = vld [vmem:[%s0 + $0x58] sm:$0xf]
  %v52 = vld [vmem:[%s0 + $0x5c] sm:$0xf]
  %v53 = vld [vmem:[%s0 + $0x60] sm:$0xf]
  %v54 = vld [vmem:[%s0 + $0x64] sm:$0xf]
  %v55 = vld [vmem:[%s0 + $0x68] sm:$0xf]
  %v56 = vld [vmem:[%s0 + $0x6c] sm:$0xf]
  %v57 = vld [vmem:[%s0 + $0x70] sm:$0xf]
  %v58 = vld [vmem:[%s0 + $0x74] sm:$0xf]
  %v59 = vld [vmem:[%s0 + $0x78] sm:$0xf]
  %v60 = vld [vmem:[%s0 + $0x7c] sm:$0xf]
  %v61 = vld [vmem:[%s0 + $0x80] sm:$0xf]
  %v62 = vld [vmem:[%s0 + $0x84] sm:$0xf]
  %v63 = vld [vmem:[%s0 + $0x88] sm:$0xf]
  %v64 = vld [vmem:[%s0 + $0x8c] sm:$0xf]
  %v65 = vld [vmem:[%s0 + $0x90] sm:$0xf]
  %v66 = vld [vmem:[%s0 + $0x94] sm:$0xf]
  %v67 = vld [vmem:[%s0 + $0x98] sm:$0xf]
  %v68 = vld [vmem:[%s0 + $0x9c] sm:$0xf]
  %v69 = vld [vmem:[%s0 + $0xa0] sm:$0xf]
  %v70 = vld [vmem:[%s0 + $0xa4] sm:$0xf]
  %v71 = vld [vmem:[%s0 + $0xa8] sm:$0xf]
  %v72 = vld [vmem:[%s0 + $0xac] sm:$0xf]
  %v73 = vld [vmem:[%s0 + $0xb0] sm:$0xf]
  %v74 = vld [vmem:[%s0 + $0xb4] sm:$0xf]
  %v75 = vld [vmem:[%s0 + $0xb8] sm:$0xf]
  %v76 = vld [vmem:[%s0 + $0xbc] sm:$0xf]
  %v77 = vld [vmem:[%s0 + $0xc0] sm:$0xf]
  %v78 = vld [vmem:[%s0 + $0xc4] sm:$0xf]
  %v79 = vld [vmem:[%s0 + $0xc8] sm:$0xf]
  %v80 = vld [vmem:[%s0 + $0xcc] sm:$0xf]
  %v81 = vld [vmem:[%s0 + $0xd0] sm:$0xf]
  %v82 = vld [vmem:[%s0 + $0xd4] sm:$0xf]
  %v83 = vld [vmem:[%s0 + $0xd8] sm:$0xf]
  %v84 = vld [vmem:[%s0 + $0xdc] sm:$0xf]
  %v85 = vld [vmem:[%s0 + $0xe0] sm:$0xf]
  %v86 = vld [vmem:[%s0 + $0xe4] sm:$0xf]
  %v87 = vld [vmem:[%s0 + $0xe8] sm:$0xf]
  %v88 = vld [vmem:[%s0 + $0xec] sm:$0xf]
  %v89 = vld [vmem:[%s0 + $0xf0] sm:$0xf]
  %v90 = vld [vmem:[%s0 + $0xf4] sm:$0xf]
  %v91 = vld [vmem:[%s0 + $0xf8] sm:$0xf]
  %v92 = vld [vmem:[%s0 + $0xfc] sm:$0xf]
  %v93 = vld [vmem:[%s0 + $0x100] sm:$0xf]
  %v94 = vld [vmem:[%s0 + $0x104] sm:$0xf]
  %v95 = vld [vmem:[%s0 + $0x108] sm:$0xf]
  %v96 = vld [vmem:[%s0 + $0x10c] sm:$0xf]
  %v97 = vld [vmem:[%s0 + $0x110] sm:$0xf]
  %v98 = vld [vmem:[%s0 + $0x114] sm:$0xf]
  %v99 = vld [vmem:[%s0 + $0x118] sm:$0xf]
  %v100 = vld [vmem:[%s0 + $0x11c] sm:$0xf]
  %v101 = vld [vmem:[%s0 + $0x120] sm:$0xf]
  %v102 = vld [vmem:[%s0 + $0x124] sm:$0xf]
  %v103 = vld [vmem:[%s0 + $0x128] sm:$0xf]
  %v104 = vld [vmem:[%s0 + $0x12c] sm:$0xf]
  %v105 = vld [vmem:[%s0 + $0x130] sm:$0xf]
  %v106 = vld [vmem:[%s0 + $0x134] sm:$0xf]
  %v107 = vld [vmem:[%s0 + $0x138] sm:$0xf]
  %v108 = vld [vmem:[%s0 + $0x13c] sm:$0xf]
  %v109 = vld [vmem:[%s0 + $0x140] sm:$0xf]
  %v110 = vld [vmem:[%s0 + $0x144] sm:$0xf]
  %v111 = vld [vmem:[%s0 + $0x148] sm:$0xf]
  %v112 = vld [vmem:[%s0 + $0x14c] sm:$0xf]
  %v113 = vld [vmem:[%s0 + $0x150] sm:$0xf]
  %v114 = vld [vmem:[%s0 + $0x154] sm:$0xf]
  %v115 = vld [vmem:[%s0 + $0x158] sm:$0xf]
  %v116 = vld [vmem:[%s0 + $0x15c] sm:$0xf]
  %v117 = vld [vmem:[%s0 + $0x160] sm:$0xf]
  %v118 = vld [vmem:[%s0 + $0x164] sm:$0xf]
  %v119 = vld [vmem:[%s0 + $0x168] sm:$0xf]
  %v120 = vld [vmem:[%s0 + $0x16c] sm:$0xf]
  %v121 = vld [vmem:[%s0 + $0x170] sm:$0xf]
  %v122 = vld [vmem:[%s0 + $0x174] sm:$0xf]
  %v123 = vld [vmem:[%s0 + $0x178] sm:$0xf]
  %v124 = vld [vmem:[%s0 + $0x17c] sm:$0xf]
  %v125 = vld [vmem:[%s0 + $0x180] sm:$0xf]
  %v126 = vld [vmem:[%s0 + $0x184] sm:$0xf]
  %v127 = vld [vmem:[%s0 + $0x188] sm:$0xf]
  %v128 = vld [vmem:[%s0 + $0x18c] sm:$0xf]
  %v129 = vld [vmem:[%s0 + $0x190] sm:$0xf]
  %v130 = vld [vmem:[%s0 + $0x194] sm:$0xf]
  %v131 = vld [vmem:[%s0 + $0x198] sm:$0xf]
  %v132 = vld [vmem:[%s0 + $0x19c] sm:$0xf]
  %v133 = vld [vmem:[%s0 + $0x1a0] sm:$0xf]
  %v134 = vld [vmem:[%s0 + $0x1a4] sm:$0xf]
  %v135 = vld [vmem:[%s0 + $0x1a8] sm:$0xf]
  %v136 = vld [vmem:[%s0 + $0x1ac] sm:$0xf]
  %v137 = vld [vmem:[%s0 + $0x1b0] sm:$0xf]
  %v138 = vld [vmem:[%s0 + $0x1b4] sm:$0xf]
  %v139 = vld [vmem:[%s0 + $0x1b8] sm:$0xf]
  %v140 = vld [vmem:[%s0 + $0x1bc] sm:$0xf]
  %v141 = vld [vmem:[%s0 + $0x1c0] sm:$0xf]
  %v142 = vld [vmem:[%s0 + $0x1c4] sm:$0xf]
  %v143 = vld [vmem:[%s0 + $0x1c8] sm:$0xf]
  %v144 = vld [vmem:[%s0 + $0x1cc] sm:$0xf]
  %v145 = vld [vmem:[%s0 + $0x1d0] sm:$0xf]
  %v146 = vld [vmem:[%s0 + $0x1d4] sm:$0xf]
  %v147 = vld [vmem:[%s0 + $0x1d8] sm:$0xf]
  %v148 = vld [vmem:[%s0 + $0x1dc] sm:$0xf]
  %v149 = vld [vmem:[%s0 + $0x1e0] sm:$0xf]
  %v150 = vld [vmem:[%s0 + $0x1e4] sm:$0xf]
  %v151 = vld [vmem:[%s0 + $0x1e8] sm:$0xf]
  %v152 = vld [vmem:[%s0 + $0x1ec] sm:$0xf]
  %v153 = vld [vmem:[%s0 + $0x1f0] sm:$0xf]
  %v154 = vld [vmem:[%s0 + $0x1f4] sm:$0xf]
  %v155 = vld [vmem:[%s0 + $0x1f8] sm:$0xf]
  %v156 = vld [vmem:[%s0 + $0x1fc] sm:$0xf]
  %v157 = vld [vmem:[%s1] sm:$0xf]
  %v158 = vld [vmem:[%s1 + $0x4] sm:$0xf]
  %v159 = vld [vmem:[%s1 + $0x8] sm:$0xf]
  %v160 = vld [vmem:[%s1 + $0xc] sm:$0xf]
  %v161 = vld [vmem:[%s1 + $0x10] sm:$0xf]
  %v162 = vld [vmem:[%s1 + $0x14] sm:$0xf]
  %v163 = vld [vmem:[%s1 + $0x18] sm:$0xf]
  %v164 = vld [vmem:[%s1 + $0x1c] sm:$0xf]
  %v165 = vld [vmem:[%s1 + $0x20] sm:$0xf]
  %v166 = vld [vmem:[%s1 + $0x24] sm:$0xf]
  %v167 = vld [vmem:[%s1 + $0x28] sm:$0xf]
  %v168 = vld [vmem:[%s1 + $0x2c] sm:$0xf]
  %v169 = vld [vmem:[%s1 + $0x30] sm:$0xf]
  %v170 = vld [vmem:[%s1 + $0x34] sm:$0xf]
  %v171 = vld [vmem:[%s1 + $0x38] sm:$0xf]
  %v172 = vld [vmem:[%s1 + $0x3c] sm:$0xf]
  %v173 = vld [vmem:[%s2] sm:$0x1]
  %v175 = vperm.slane %v173, 0
  %v305 = vunpack.c.l.b16 %v29
  %v306 = vunpack.c.l.b16 %v30
  %v307 = vunpack.c.l.b16 %v31
  %v308 = vunpack.c.l.b16 %v32
  %v309 = vunpack.c.l.b16 %v33
  %v310 = vunpack.c.l.b16 %v34
  %v311 = vunpack.c.l.b16 %v35
  %v312 = vunpack.c.l.b16 %v36
  %v313 = vunpack.c.l.b16 %v37
  %v314 = vunpack.c.l.b16 %v38
  %v315 = vunpack.c.l.b16 %v39
  %v316 = vunpack.c.l.b16 %v40
  %v317 = vunpack.c.l.b16 %v41
  %v318 = vunpack.c.l.b16 %v42
  %v319 = vunpack.c.l.b16 %v43
  %v320 = vunpack.c.l.b16 %v44
  %v321 = vunpack.c.l.b16 %v45
  %v322 = vunpack.c.l.b16 %v46
  %v323 = vunpack.c.l.b16 %v47
  %v324 = vunpack.c.l.b16 %v48
  %v325 = vunpack.c.l.b16 %v49
  %v326 = vunpack.c.l.b16 %v50
  %v327 = vunpack.c.l.b16 %v51
  %v328 = vunpack.c.l.b16 %v52
  %v329 = vunpack.c.l.b16 %v53
  %v330 = vunpack.c.l.b16 %v54
  %v331 = vunpack.c.l.b16 %v55
  %v332 = vunpack.c.l.b16 %v56
  %v333 = vunpack.c.l.b16 %v57
  %v334 = vunpack.c.l.b16 %v58
  %v335 = vunpack.c.l.b16 %v59
  %v336 = vunpack.c.l.b16 %v60
  %v337 = vunpack.c.l.b16 %v61
  %v338 = vunpack.c.l.b16 %v62
  %v339 = vunpack.c.l.b16 %v63
  %v340 = vunpack.c.l.b16 %v64
  %v341 = vunpack.c.l.b16 %v65
  %v342 = vunpack.c.l.b16 %v66
  %v343 = vunpack.c.l.b16 %v67
  %v344 = vunpack.c.l.b16 %v68
  %v345 = vunpack.c.l.b16 %v69
  %v346 = vunpack.c.l.b16 %v70
  %v347 = vunpack.c.l.b16 %v71
  %v348 = vunpack.c.l.b16 %v72
  %v349 = vunpack.c.l.b16 %v73
  %v350 = vunpack.c.l.b16 %v74
  %v351 = vunpack.c.l.b16 %v75
  %v352 = vunpack.c.l.b16 %v76
  %v353 = vunpack.c.l.b16 %v77
  %v354 = vunpack.c.l.b16 %v78
  %v355 = vunpack.c.l.b16 %v79
  %v356 = vunpack.c.l.b16 %v80
  %v357 = vunpack.c.l.b16 %v81
  %v358 = vunpack.c.l.b16 %v82
  %v359 = vunpack.c.l.b16 %v83
  %v360 = vunpack.c.l.b16 %v84
  %v361 = vunpack.c.l.b16 %v85
  %v362 = vunpack.c.l.b16 %v86
  %v363 = vunpack.c.l.b16 %v87
  %v364 = vunpack.c.l.b16 %v88
  %v365 = vunpack.c.l.b16 %v89
  %v366 = vunpack.c.l.b16 %v90
  %v367 = vunpack.c.l.b16 %v91
  %v368 = vunpack.c.l.b16 %v92
  %v369 = vunpack.c.l.b16 %v93
  %v370 = vunpack.c.l.b16 %v94
  %v371 = vunpack.c.l.b16 %v95
  %v372 = vunpack.c.l.b16 %v96
  %v373 = vunpack.c.l.b16 %v97
  %v374 = vunpack.c.l.b16 %v98
  %v375 = vunpack.c.l.b16 %v99
  %v376 = vunpack.c.l.b16 %v100
  %v377 = vunpack.c.l.b16 %v101
  %v378 = vunpack.c.l.b16 %v102
  %v379 = vunpack.c.l.b16 %v103
  %v380 = vunpack.c.l.b16 %v104
  %v381 = vunpack.c.l.b16 %v105
  %v382 = vunpack.c.l.b16 %v106
  %v383 = vunpack.c.l.b16 %v107
  %v384 = vunpack.c.l.b16 %v108
  %v385 = vunpack.c.l.b16 %v109
  %v386 = vunpack.c.l.b16 %v110
  %v387 = vunpack.c.l.b16 %v111
  %v388 = vunpack.c.l.b16 %v112
  %v389 = vunpack.c.l.b16 %v113
  %v390 = vunpack.c.l.b16 %v114
  %v391 = vunpack.c.l.b16 %v115
  %v392 = vunpack.c.l.b16 %v116
  %v393 = vunpack.c.l.b16 %v117
  %v394 = vunpack.c.l.b16 %v118
  %v395 = vunpack.c.l.b16 %v119
  %v396 = vunpack.c.l.b16 %v120
  %v397 = vunpack.c.l.b16 %v121
  %v398 = vunpack.c.l.b16 %v122
  %v399 = vunpack.c.l.b16 %v123
  %v400 = vunpack.c.l.b16 %v124
  %v401 = vunpack.c.l.b16 %v125
  %v402 = vunpack.c.l.b16 %v126
  %v403 = vunpack.c.l.b16 %v127
  %v404 = vunpack.c.l.b16 %v128
  %v405 = vunpack.c.l.b16 %v129
  %v406 = vunpack.c.l.b16 %v130
  %v407 = vunpack.c.l.b16 %v131
  %v408 = vunpack.c.l.b16 %v132
  %v409 = vunpack.c.l.b16 %v133
  %v410 = vunpack.c.l.b16 %v134
  %v411 = vunpack.c.l.b16 %v135
  %v412 = vunpack.c.l.b16 %v136
  %v413 = vunpack.c.l.b16 %v137
  %v414 = vunpack.c.l.b16 %v138
  %v415 = vunpack.c.l.b16 %v139
  %v416 = vunpack.c.l.b16 %v140
  %v417 = vunpack.c.l.b16 %v141
  %v418 = vunpack.c.l.b16 %v142
  %v419 = vunpack.c.l.b16 %v143
  %v420 = vunpack.c.l.b16 %v144
  %v421 = vunpack.c.l.b16 %v145
  %v422 = vunpack.c.l.b16 %v146
  %v423 = vunpack.c.l.b16 %v147
  %v424 = vunpack.c.l.b16 %v148
  %v425 = vunpack.c.l.b16 %v149
  %v426 = vunpack.c.l.b16 %v150
  %v427 = vunpack.c.l.b16 %v151
  %v428 = vunpack.c.l.b16 %v152
  %v429 = vunpack.c.l.b16 %v153
  %v430 = vunpack.c.l.b16 %v154
  %v431 = vunpack.c.l.b16 %v155
  %v432 = vunpack.c.l.b16 %v156
  %v433 = vpack.c.b16 %v306, %v305
  %v434 = vpack.c.b16 %v308, %v307
  %v435 = vpack.c.b16 %v310, %v309
  %v436 = vpack.c.b16 %v312, %v311
  %v437 = vpack.c.b16 %v314, %v313
  %v438 = vpack.c.b16 %v316, %v315
  %v439 = vpack.c.b16 %v318, %v317
  %v440 = vpack.c.b16 %v320, %v319
  %v441 = vpack.c.b16 %v322, %v321
  %v442 = vpack.c.b16 %v324, %v323
  %v443 = vpack.c.b16 %v326, %v325
  %v444 = vpack.c.b16 %v328, %v327
  %v445 = vpack.c.b16 %v330, %v329
  %v446 = vpack.c.b16 %v332, %v331
  %v447 = vpack.c.b16 %v334, %v333
  %v448 = vpack.c.b16 %v336, %v335
  %v449 = vpack.c.b16 %v338, %v337
  %v450 = vpack.c.b16 %v340, %v339
  %v451 = vpack.c.b16 %v342, %v341
  %v452 = vpack.c.b16 %v344, %v343
  %v453 = vpack.c.b16 %v346, %v345
  %v454 = vpack.c.b16 %v348, %v347
  %v455 = vpack.c.b16 %v350, %v349
  %v456 = vpack.c.b16 %v352, %v351
  %v457 = vpack.c.b16 %v354, %v353
  %v458 = vpack.c.b16 %v356, %v355
  %v459 = vpack.c.b16 %v358, %v357
  %v460 = vpack.c.b16 %v360, %v359
  %v461 = vpack.c.b16 %v362, %v361
  %v462 = vpack.c.b16 %v364, %v363
  %v463 = vpack.c.b16 %v366, %v365
  %v464 = vpack.c.b16 %v368, %v367
  %v465 = vpack.c.b16 %v370, %v369
  %v466 = vpack.c.b16 %v372, %v371
  %v467 = vpack.c.b16 %v374, %v373
  %v468 = vpack.c.b16 %v376, %v375
  %v469 = vpack.c.b16 %v378, %v377
  %v470 = vpack.c.b16 %v380, %v379
  %v471 = vpack.c.b16 %v382, %v381
  %v472 = vpack.c.b16 %v384, %v383
  %v473 = vpack.c.b16 %v386, %v385
  %v474 = vpack.c.b16 %v388, %v387
  %v475 = vpack.c.b16 %v390, %v389
  %v476 = vpack.c.b16 %v392, %v391
  %v477 = vpack.c.b16 %v394, %v393
  %v478 = vpack.c.b16 %v396, %v395
  %v479 = vpack.c.b16 %v398, %v397
  %v480 = vpack.c.b16 %v400, %v399
  %v481 = vpack.c.b16 %v402, %v401
  %v482 = vpack.c.b16 %v404, %v403
  %v483 = vpack.c.b16 %v406, %v405
  %v484 = vpack.c.b16 %v408, %v407
  %v485 = vpack.c.b16 %v410, %v409
  %v486 = vpack.c.b16 %v412, %v411
  %v487 = vpack.c.b16 %v414, %v413
  %v488 = vpack.c.b16 %v416, %v415
  %v489 = vpack.c.b16 %v418, %v417
  %v490 = vpack.c.b16 %v420, %v419
  %v491 = vpack.c.b16 %v422, %v421
  %v492 = vpack.c.b16 %v424, %v423
  %v493 = vpack.c.b16 %v426, %v425
  %v494 = vpack.c.b16 %v428, %v427
  %v495 = vpack.c.b16 %v430, %v429
  %v496 = vpack.c.b16 %v432, %v431
  %v577 = vunpack.c.l.b16 %v157
  %v578 = vunpack.c.l.b16 %v158
  %v579 = vunpack.c.l.b16 %v159
  %v580 = vunpack.c.l.b16 %v160
  %v581 = vunpack.c.l.b16 %v161
  %v582 = vunpack.c.l.b16 %v162
  %v583 = vunpack.c.l.b16 %v163
  %v584 = vunpack.c.l.b16 %v164
  %v585 = vunpack.c.l.b16 %v165
  %v586 = vunpack.c.l.b16 %v166
  %v587 = vunpack.c.l.b16 %v167
  %v588 = vunpack.c.l.b16 %v168
  %v589 = vunpack.c.l.b16 %v169
  %v590 = vunpack.c.l.b16 %v170
  %v591 = vunpack.c.l.b16 %v171
  %v592 = vunpack.c.l.b16 %v172
  %v593 = vpack.c.b16 %v578, %v577
  %v594 = vpack.c.b16 %v580, %v579
  %v595 = vpack.c.b16 %v582, %v581
  %v596 = vpack.c.b16 %v584, %v583
  %v597 = vpack.c.b16 %v586, %v585
  %v598 = vpack.c.b16 %v588, %v587
  %v599 = vpack.c.b16 %v590, %v589
  %v600 = vpack.c.b16 %v592, %v591
  %609 = vmatpush.bf16.msra.mxu0 %v600
  %610 = vmatpush.bf16.msra.mxu0 %v599
  %611 = vmatpush.bf16.msra.mxu0 %v598
  %612 = vmatpush.bf16.msra.mxu0 %v597
  %613 = vmatpush.bf16.msra.mxu0 %v596
  %614 = vmatpush.bf16.msra.mxu0 %v595
  %615 = vmatpush.bf16.msra.mxu0 %v594
  %616 = vmatpush.bf16.msra.mxu0 %v593
  %617 = vmatmul.bf16.gmra.mxu0 %v433
  %v618 = vpop.f32.mrf.mxu0
  %v619 = vadd.f32 %v175, %v618
  %v620 = vpop.f32.mrf.mxu0
  %v621 = vadd.f32 %v175, %v620
  %622 = vmatmul.bf16.gmra.mxu0 %v434
  %v623 = vpop.f32.mrf.mxu0
  %v624 = vadd.f32 %v175, %v623
  %v625 = vpop.f32.mrf.mxu0
  %v626 = vadd.f32 %v175, %v625
  %627 = vmatmul.bf16.gmra.mxu0 %v435
  %v628 = vpop.f32.mrf.mxu0
  %v629 = vadd.f32 %v175, %v628
  %v630 = vpop.f32.mrf.mxu0
  %v631 = vadd.f32 %v175, %v630
  %632 = vmatmul.bf16.gmra.mxu0 %v436
  %v633 = vpop.f32.mrf.mxu0
  %v634 = vadd.f32 %v175, %v633
  %v635 = vpop.f32.mrf.mxu0
  %v636 = vadd.f32 %v175, %v635
  %637 = vmatmul.bf16.gmra.mxu0 %v437
  %v638 = vpop.f32.mrf.mxu0
  %v639 = vadd.f32 %v175, %v638
  %v640 = vpop.f32.mrf.mxu0
  %v641 = vadd.f32 %v175, %v640
  %642 = vmatmul.bf16.gmra.mxu0 %v438
  %v643 = vpop.f32.mrf.mxu0
  %v644 = vadd.f32 %v175, %v643
  %v645 = vpop.f32.mrf.mxu0
  %v646 = vadd.f32 %v175, %v645
  %647 = vmatmul.bf16.gmra.mxu0 %v439
  %v648 = vpop.f32.mrf.mxu0
  %v649 = vadd.f32 %v175, %v648
  %v650 = vpop.f32.mrf.mxu0
  %v651 = vadd.f32 %v175, %v650
  %652 = vmatmul.bf16.gmra.mxu0 %v440
  %v653 = vpop.f32.mrf.mxu0
  %v654 = vadd.f32 %v175, %v653
  %v655 = vpop.f32.mrf.mxu0
  %v656 = vadd.f32 %v175, %v655
  %657 = vmatmul.bf16.gmra.mxu0 %v441
  %v658 = vpop.f32.mrf.mxu0
  %v659 = vadd.f32 %v175, %v658
  %v660 = vpop.f32.mrf.mxu0
  %v661 = vadd.f32 %v175, %v660
  %662 = vmatmul.bf16.gmra.mxu0 %v442
  %v663 = vpop.f32.mrf.mxu0
  %v664 = vadd.f32 %v175, %v663
  %v665 = vpop.f32.mrf.mxu0
  %v666 = vadd.f32 %v175, %v665
  %667 = vmatmul.bf16.gmra.mxu0 %v443
  %v668 = vpop.f32.mrf.mxu0
  %v669 = vadd.f32 %v175, %v668
  %v670 = vpop.f32.mrf.mxu0
  %v671 = vadd.f32 %v175, %v670
  %672 = vmatmul.bf16.gmra.mxu0 %v444
  %v673 = vpop.f32.mrf.mxu0
  %v674 = vadd.f32 %v175, %v673
  %v675 = vpop.f32.mrf.mxu0
  %v676 = vadd.f32 %v175, %v675
  %677 = vmatmul.bf16.gmra.mxu0 %v445
  %v678 = vpop.f32.mrf.mxu0
  %v679 = vadd.f32 %v175, %v678
  %v680 = vpop.f32.mrf.mxu0
  %v681 = vadd.f32 %v175, %v680
  %682 = vmatmul.bf16.gmra.mxu0 %v446
  %v683 = vpop.f32.mrf.mxu0
  %v684 = vadd.f32 %v175, %v683
  %v685 = vpop.f32.mrf.mxu0
  %v686 = vadd.f32 %v175, %v685
  %687 = vmatmul.bf16.gmra.mxu0 %v447
  %v688 = vpop.f32.mrf.mxu0
  %v689 = vadd.f32 %v175, %v688
  %v690 = vpop.f32.mrf.mxu0
  %v691 = vadd.f32 %v175, %v690
  %692 = vmatmul.bf16.gmra.mxu0 %v448
  %v693 = vpop.f32.mrf.mxu0
  %v694 = vadd.f32 %v175, %v693
  %v695 = vpop.f32.mrf.mxu0
  %v696 = vadd.f32 %v175, %v695
  %697 = vmatmul.bf16.gmra.mxu0 %v449
  %v698 = vpop.f32.mrf.mxu0
  %v699 = vadd.f32 %v175, %v698
  %v700 = vpop.f32.mrf.mxu0
  %v701 = vadd.f32 %v175, %v700
  %702 = vmatmul.bf16.gmra.mxu0 %v450
  %v703 = vpop.f32.mrf.mxu0
  %v704 = vadd.f32 %v175, %v703
  %v705 = vpop.f32.mrf.mxu0
  %v706 = vadd.f32 %v175, %v705
  %707 = vmatmul.bf16.gmra.mxu0 %v451
  %v708 = vpop.f32.mrf.mxu0
  %v709 = vadd.f32 %v175, %v708
  %v710 = vpop.f32.mrf.mxu0
  %v711 = vadd.f32 %v175, %v710
  %712 = vmatmul.bf16.gmra.mxu0 %v452
  %v713 = vpop.f32.mrf.mxu0
  %v714 = vadd.f32 %v175, %v713
  %v715 = vpop.f32.mrf.mxu0
  %v716 = vadd.f32 %v175, %v715
  %717 = vmatmul.bf16.gmra.mxu0 %v453
  %v718 = vpop.f32.mrf.mxu0
  %v719 = vadd.f32 %v175, %v718
  %v720 = vpop.f32.mrf.mxu0
  %v721 = vadd.f32 %v175, %v720
  %722 = vmatmul.bf16.gmra.mxu0 %v454
  %v723 = vpop.f32.mrf.mxu0
  %v724 = vadd.f32 %v175, %v723
  %v725 = vpop.f32.mrf.mxu0
  %v726 = vadd.f32 %v175, %v725
  %727 = vmatmul.bf16.gmra.mxu0 %v455
  %v728 = vpop.f32.mrf.mxu0
  %v729 = vadd.f32 %v175, %v728
  %v730 = vpop.f32.mrf.mxu0
  %v731 = vadd.f32 %v175, %v730
  %732 = vmatmul.bf16.gmra.mxu0 %v456
  %v733 = vpop.f32.mrf.mxu0
  %v734 = vadd.f32 %v175, %v733
  %v735 = vpop.f32.mrf.mxu0
  %v736 = vadd.f32 %v175, %v735
  %737 = vmatmul.bf16.gmra.mxu0 %v457
  %v738 = vpop.f32.mrf.mxu0
  %v739 = vadd.f32 %v175, %v738
  %v740 = vpop.f32.mrf.mxu0
  %v741 = vadd.f32 %v175, %v740
  %742 = vmatmul.bf16.gmra.mxu0 %v458
  %v743 = vpop.f32.mrf.mxu0
  %v744 = vadd.f32 %v175, %v743
  %v745 = vpop.f32.mrf.mxu0
  %v746 = vadd.f32 %v175, %v745
  %747 = vmatmul.bf16.gmra.mxu0 %v459
  %v748 = vpop.f32.mrf.mxu0
  %v749 = vadd.f32 %v175, %v748
  %v750 = vpop.f32.mrf.mxu0
  %v751 = vadd.f32 %v175, %v750
  %752 = vmatmul.bf16.gmra.mxu0 %v460
  %v753 = vpop.f32.mrf.mxu0
  %v754 = vadd.f32 %v175, %v753
  %v755 = vpop.f32.mrf.mxu0
  %v756 = vadd.f32 %v175, %v755
  %757 = vmatmul.bf16.gmra.mxu0 %v461
  %v758 = vpop.f32.mrf.mxu0
  %v759 = vadd.f32 %v175, %v758
  %v760 = vpop.f32.mrf.mxu0
  %v761 = vadd.f32 %v175, %v760
  %762 = vmatmul.bf16.gmra.mxu0 %v462
  %v763 = vpop.f32.mrf.mxu0
  %v764 = vadd.f32 %v175, %v763
  %v765 = vpop.f32.mrf.mxu0
  %v766 = vadd.f32 %v175, %v765
  %767 = vmatmul.bf16.gmra.mxu0 %v463
  %v768 = vpop.f32.mrf.mxu0
  %v769 = vadd.f32 %v175, %v768
  %v770 = vpop.f32.mrf.mxu0
  %v771 = vadd.f32 %v175, %v770
  %772 = vmatmul.bf16.gmra.mxu0 %v464
  %v773 = vpop.f32.mrf.mxu0
  %v774 = vadd.f32 %v175, %v773
  %v775 = vpop.f32.mrf.mxu0
  %v776 = vadd.f32 %v175, %v775
  %777 = vmatmul.bf16.gmra.mxu0 %v465
  %v778 = vpop.f32.mrf.mxu0
  %v779 = vadd.f32 %v175, %v778
  %v780 = vpop.f32.mrf.mxu0
  %v781 = vadd.f32 %v175, %v780
  %782 = vmatmul.bf16.gmra.mxu0 %v466
  %v783 = vpop.f32.mrf.mxu0
  %v784 = vadd.f32 %v175, %v783
  %v785 = vpop.f32.mrf.mxu0
  %v786 = vadd.f32 %v175, %v785
  %787 = vmatmul.bf16.gmra.mxu0 %v467
  %v788 = vpop.f32.mrf.mxu0
  %v789 = vadd.f32 %v175, %v788
  %v790 = vpop.f32.mrf.mxu0
  %v791 = vadd.f32 %v175, %v790
  %792 = vmatmul.bf16.gmra.mxu0 %v468
  %v793 = vpop.f32.mrf.mxu0
  %v794 = vadd.f32 %v175, %v793
  %v795 = vpop.f32.mrf.mxu0
  %v796 = vadd.f32 %v175, %v795
  %797 = vmatmul.bf16.gmra.mxu0 %v469
  %v798 = vpop.f32.mrf.mxu0
  %v799 = vadd.f32 %v175, %v798
  %v800 = vpop.f32.mrf.mxu0
  %v801 = vadd.f32 %v175, %v800
  %802 = vmatmul.bf16.gmra.mxu0 %v470
  %v803 = vpop.f32.mrf.mxu0
  %v804 = vadd.f32 %v175, %v803
  %v805 = vpop.f32.mrf.mxu0
  %v806 = vadd.f32 %v175, %v805
  %807 = vmatmul.bf16.gmra.mxu0 %v471
  %v808 = vpop.f32.mrf.mxu0
  %v809 = vadd.f32 %v175, %v808
  %v810 = vpop.f32.mrf.mxu0
  %v811 = vadd.f32 %v175, %v810
  %812 = vmatmul.bf16.gmra.mxu0 %v472
  %v813 = vpop.f32.mrf.mxu0
  %v814 = vadd.f32 %v175, %v813
  %v815 = vpop.f32.mrf.mxu0
  %v816 = vadd.f32 %v175, %v815
  %817 = vmatmul.bf16.gmra.mxu0 %v473
  %v818 = vpop.f32.mrf.mxu0
  %v819 = vadd.f32 %v175, %v818
  %v820 = vpop.f32.mrf.mxu0
  %v821 = vadd.f32 %v175, %v820
  %822 = vmatmul.bf16.gmra.mxu0 %v474
  %v823 = vpop.f32.mrf.mxu0
  %v824 = vadd.f32 %v175, %v823
  %v825 = vpop.f32.mrf.mxu0
  %v826 = vadd.f32 %v175, %v825
  %827 = vmatmul.bf16.gmra.mxu0 %v475
  %v828 = vpop.f32.mrf.mxu0
  %v829 = vadd.f32 %v175, %v828
  %v830 = vpop.f32.mrf.mxu0
  %v831 = vadd.f32 %v175, %v830
  %832 = vmatmul.bf16.gmra.mxu0 %v476
  %v833 = vpop.f32.mrf.mxu0
  %v834 = vadd.f32 %v175, %v833
  %v835 = vpop.f32.mrf.mxu0
  %v836 = vadd.f32 %v175, %v835
  %837 = vmatmul.bf16.gmra.mxu0 %v477
  %v838 = vpop.f32.mrf.mxu0
  %v839 = vadd.f32 %v175, %v838
  %v840 = vpop.f32.mrf.mxu0
  %v841 = vadd.f32 %v175, %v840
  %842 = vmatmul.bf16.gmra.mxu0 %v478
  %v843 = vpop.f32.mrf.mxu0
  %v844 = vadd.f32 %v175, %v843
  %v845 = vpop.f32.mrf.mxu0
  %v846 = vadd.f32 %v175, %v845
  %847 = vmatmul.bf16.gmra.mxu0 %v479
  %v848 = vpop.f32.mrf.mxu0
  %v849 = vadd.f32 %v175, %v848
  %v850 = vpop.f32.mrf.mxu0
  %v851 = vadd.f32 %v175, %v850
  %852 = vmatmul.bf16.gmra.mxu0 %v480
  %v853 = vpop.f32.mrf.mxu0
  %v854 = vadd.f32 %v175, %v853
  %v855 = vpop.f32.mrf.mxu0
  %v856 = vadd.f32 %v175, %v855
  %857 = vmatmul.bf16.gmra.mxu0 %v481
  %v858 = vpop.f32.mrf.mxu0
  %v859 = vadd.f32 %v175, %v858
  %v860 = vpop.f32.mrf.mxu0
  %v861 = vadd.f32 %v175, %v860
  %862 = vmatmul.bf16.gmra.mxu0 %v482
  %v863 = vpop.f32.mrf.mxu0
  %v864 = vadd.f32 %v175, %v863
  %v865 = vpop.f32.mrf.mxu0
  %v866 = vadd.f32 %v175, %v865
  %867 = vmatmul.bf16.gmra.mxu0 %v483
  %v868 = vpop.f32.mrf.mxu0
  %v869 = vadd.f32 %v175, %v868
  %v870 = vpop.f32.mrf.mxu0
  %v871 = vadd.f32 %v175, %v870
  %872 = vmatmul.bf16.gmra.mxu0 %v484
  %v873 = vpop.f32.mrf.mxu0
  %v874 = vadd.f32 %v175, %v873
  %v875 = vpop.f32.mrf.mxu0
  %v876 = vadd.f32 %v175, %v875
  %877 = vmatmul.bf16.gmra.mxu0 %v485
  %v878 = vpop.f32.mrf.mxu0
  %v879 = vadd.f32 %v175, %v878
  %v880 = vpop.f32.mrf.mxu0
  %v881 = vadd.f32 %v175, %v880
  %882 = vmatmul.bf16.gmra.mxu0 %v486
  %v883 = vpop.f32.mrf.mxu0
  %v884 = vadd.f32 %v175, %v883
  %v885 = vpop.f32.mrf.mxu0
  %v886 = vadd.f32 %v175, %v885
  %887 = vmatmul.bf16.gmra.mxu0 %v487
  %v888 = vpop.f32.mrf.mxu0
  %v889 = vadd.f32 %v175, %v888
  %v890 = vpop.f32.mrf.mxu0
  %v891 = vadd.f32 %v175, %v890
  %892 = vmatmul.bf16.gmra.mxu0 %v488
  %v893 = vpop.f32.mrf.mxu0
  %v894 = vadd.f32 %v175, %v893
  %v895 = vpop.f32.mrf.mxu0
  %v896 = vadd.f32 %v175, %v895
  %897 = vmatmul.bf16.gmra.mxu0 %v489
  %v898 = vpop.f32.mrf.mxu0
  %v899 = vadd.f32 %v175, %v898
  %v900 = vpop.f32.mrf.mxu0
  %v901 = vadd.f32 %v175, %v900
  %902 = vmatmul.bf16.gmra.mxu0 %v490
  %v903 = vpop.f32.mrf.mxu0
  %v904 = vadd.f32 %v175, %v903
  %v905 = vpop.f32.mrf.mxu0
  %v906 = vadd.f32 %v175, %v905
  %907 = vmatmul.bf16.gmra.mxu0 %v491
  %v908 = vpop.f32.mrf.mxu0
  %v909 = vadd.f32 %v175, %v908
  %v910 = vpop.f32.mrf.mxu0
  %v911 = vadd.f32 %v175, %v910
  %912 = vmatmul.bf16.gmra.mxu0 %v492
  %v913 = vpop.f32.mrf.mxu0
  %v914 = vadd.f32 %v175, %v913
  %v915 = vpop.f32.mrf.mxu0
  %v916 = vadd.f32 %v175, %v915
  %917 = vmatmul.bf16.gmra.mxu0 %v493
  %v918 = vpop.f32.mrf.mxu0
  %v919 = vadd.f32 %v175, %v918
  %v920 = vpop.f32.mrf.mxu0
  %v921 = vadd.f32 %v175, %v920
  %922 = vmatmul.bf16.gmra.mxu0 %v494
  %v923 = vpop.f32.mrf.mxu0
  %v924 = vadd.f32 %v175, %v923
  %v925 = vpop.f32.mrf.mxu0
  %v926 = vadd.f32 %v175, %v925
  %927 = vmatmul.bf16.gmra.mxu0 %v495
  %v928 = vpop.f32.mrf.mxu0
  %v929 = vadd.f32 %v175, %v928
  %v930 = vpop.f32.mrf.mxu0
  %v931 = vadd.f32 %v175, %v930
  %932 = vmatmul.bf16.gmra.mxu0 %v496
  %v933 = vpop.f32.mrf.mxu0
  %v934 = vadd.f32 %v175, %v933
  %v935 = vpop.f32.mrf.mxu0
  %v936 = vadd.f32 %v175, %v935
  %937 = vdwg.mxu0
  %v938 = vmax.f32 %v619, 0.0
  %v939 = vmax.f32 %v621, 0.0
  %v940 = vmax.f32 %v624, 0.0
  %v941 = vmax.f32 %v626, 0.0
  %v942 = vmax.f32 %v629, 0.0
  %v943 = vmax.f32 %v631, 0.0
  %v944 = vmax.f32 %v634, 0.0
  %v945 = vmax.f32 %v636, 0.0
  %v946 = vmax.f32 %v639, 0.0
  %v947 = vmax.f32 %v641, 0.0
  %v948 = vmax.f32 %v644, 0.0
  %v949 = vmax.f32 %v646, 0.0
  %v950 = vmax.f32 %v649, 0.0
  %v951 = vmax.f32 %v651, 0.0
  %v952 = vmax.f32 %v654, 0.0
  %v953 = vmax.f32 %v656, 0.0
  %v954 = vmax.f32 %v659, 0.0
  %v955 = vmax.f32 %v661, 0.0
  %v956 = vmax.f32 %v664, 0.0
  %v957 = vmax.f32 %v666, 0.0
  %v958 = vmax.f32 %v669, 0.0
  %v959 = vmax.f32 %v671, 0.0
  %v960 = vmax.f32 %v674, 0.0
  %v961 = vmax.f32 %v676, 0.0
  %v962 = vmax.f32 %v679, 0.0
  %v963 = vmax.f32 %v681, 0.0
  %v964 = vmax.f32 %v684, 0.0
  %v965 = vmax.f32 %v686, 0.0
  %v966 = vmax.f32 %v689, 0.0
  %v967 = vmax.f32 %v691, 0.0
  %v968 = vmax.f32 %v694, 0.0
  %v969 = vmax.f32 %v696, 0.0
  %v970 = vmax.f32 %v699, 0.0
  %v971 = vmax.f32 %v701, 0.0
  %v972 = vmax.f32 %v704, 0.0
  %v973 = vmax.f32 %v706, 0.0
  %v974 = vmax.f32 %v709, 0.0
  %v975 = vmax.f32 %v711, 0.0
  %v976 = vmax.f32 %v714, 0.0
  %v977 = vmax.f32 %v716, 0.0
  %v978 = vmax.f32 %v719, 0.0
  %v979 = vmax.f32 %v721, 0.0
  %v980 = vmax.f32 %v724, 0.0
  %v981 = vmax.f32 %v726, 0.0
  %v982 = vmax.f32 %v729, 0.0
  %v983 = vmax.f32 %v731, 0.0
  %v984 = vmax.f32 %v734, 0.0
  %v985 = vmax.f32 %v736, 0.0
  %v986 = vmax.f32 %v739, 0.0
  %v987 = vmax.f32 %v741, 0.0
  %v988 = vmax.f32 %v744, 0.0
  %v989 = vmax.f32 %v746, 0.0
  %v990 = vmax.f32 %v749, 0.0
  %v991 = vmax.f32 %v751, 0.0
  %v992 = vmax.f32 %v754, 0.0
  %v993 = vmax.f32 %v756, 0.0
  %v994 = vmax.f32 %v759, 0.0
  %v995 = vmax.f32 %v761, 0.0
  %v996 = vmax.f32 %v764, 0.0
  %v997 = vmax.f32 %v766, 0.0
  %v998 = vmax.f32 %v769, 0.0
  %v999 = vmax.f32 %v771, 0.0
  %v1000 = vmax.f32 %v774, 0.0
  %v1001 = vmax.f32 %v776, 0.0
  %v1002 = vmax.f32 %v779, 0.0
  %v1003 = vmax.f32 %v781, 0.0
  %v1004 = vmax.f32 %v784, 0.0
  %v1005 = vmax.f32 %v786, 0.0
  %v1006 = vmax.f32 %v789, 0.0
  %v1007 = vmax.f32 %v791, 0.0
  %v1008 = vmax.f32 %v794, 0.0
  %v1009 = vmax.f32 %v796, 0.0
  %v1010 = vmax.f32 %v799, 0.0
  %v1011 = vmax.f32 %v801, 0.0
  %v1012 = vmax.f32 %v804, 0.0
  %v1013 = vmax.f32 %v806, 0.0
  %v1014 = vmax.f32 %v809, 0.0
  %v1015 = vmax.f32 %v811, 0.0
  %v1016 = vmax.f32 %v814, 0.0
  %v1017 = vmax.f32 %v816, 0.0
  %v1018 = vmax.f32 %v819, 0.0
  %v1019 = vmax.f32 %v821, 0.0
  %v1020 = vmax.f32 %v824, 0.0
  %v1021 = vmax.f32 %v826, 0.0
  %v1022 = vmax.f32 %v829, 0.0
  %v1023 = vmax.f32 %v831, 0.0
  %v1024 = vmax.f32 %v834, 0.0
  %v1025 = vmax.f32 %v836, 0.0
  %v1026 = vmax.f32 %v839, 0.0
  %v1027 = vmax.f32 %v841, 0.0
  %v1028 = vmax.f32 %v844, 0.0
  %v1029 = vmax.f32 %v846, 0.0
  %v1030 = vmax.f32 %v849, 0.0
  %v1031 = vmax.f32 %v851, 0.0
  %v1032 = vmax.f32 %v854, 0.0
  %v1033 = vmax.f32 %v856, 0.0
  %v1034 = vmax.f32 %v859, 0.0
  %v1035 = vmax.f32 %v861, 0.0
  %v1036 = vmax.f32 %v864, 0.0
  %v1037 = vmax.f32 %v866, 0.0
  %v1038 = vmax.f32 %v869, 0.0
  %v1039 = vmax.f32 %v871, 0.0
  %v1040 = vmax.f32 %v874, 0.0
  %v1041 = vmax.f32 %v876, 0.0
  %v1042 = vmax.f32 %v879, 0.0
  %v1043 = vmax.f32 %v881, 0.0
  %v1044 = vmax.f32 %v884, 0.0
  %v1045 = vmax.f32 %v886, 0.0
  %v1046 = vmax.f32 %v889, 0.0
  %v1047 = vmax.f32 %v891, 0.0
  %v1048 = vmax.f32 %v894, 0.0
  %v1049 = vmax.f32 %v896, 0.0
  %v1050 = vmax.f32 %v899, 0.0
  %v1051 = vmax.f32 %v901, 0.0
  %v1052 = vmax.f32 %v904, 0.0
  %v1053 = vmax.f32 %v906, 0.0
  %v1054 = vmax.f32 %v909, 0.0
  %v1055 = vmax.f32 %v911, 0.0
  %v1056 = vmax.f32 %v914, 0.0
  %v1057 = vmax.f32 %v916, 0.0
  %v1058 = vmax.f32 %v919, 0.0
  %v1059 = vmax.f32 %v921, 0.0
  %v1060 = vmax.f32 %v924, 0.0
  %v1061 = vmax.f32 %v926, 0.0
  %v1062 = vmax.f32 %v929, 0.0
  %v1063 = vmax.f32 %v931, 0.0
  %v1064 = vmax.f32 %v934, 0.0
  %v1065 = vmax.f32 %v936, 0.0
  %v1066 = vpack.c.bf16 %v939, %v938
  %v1067 = vpack.c.bf16 %v941, %v940
  %v1068 = vpack.c.bf16 %v943, %v942
  %v1069 = vpack.c.bf16 %v945, %v944
  %v1070 = vpack.c.bf16 %v947, %v946
  %v1071 = vpack.c.bf16 %v949, %v948
  %v1072 = vpack.c.bf16 %v951, %v950
  %v1073 = vpack.c.bf16 %v953, %v952
  %v1074 = vpack.c.bf16 %v955, %v954
  %v1075 = vpack.c.bf16 %v957, %v956
  %v1076 = vpack.c.bf16 %v959, %v958
  %v1077 = vpack.c.bf16 %v961, %v960
  %v1078 = vpack.c.bf16 %v963, %v962
  %v1079 = vpack.c.bf16 %v965, %v964
  %v1080 = vpack.c.bf16 %v967, %v966
  %v1081 = vpack.c.bf16 %v969, %v968
  %v1082 = vpack.c.bf16 %v971, %v970
  %v1083 = vpack.c.bf16 %v973, %v972
  %v1084 = vpack.c.bf16 %v975, %v974
  %v1085 = vpack.c.bf16 %v977, %v976
  %v1086 = vpack.c.bf16 %v979, %v978
  %v1087 = vpack.c.bf16 %v981, %v980
  %v1088 = vpack.c.bf16 %v983, %v982
  %v1089 = vpack.c.bf16 %v985, %v984
  %v1090 = vpack.c.bf16 %v987, %v986
  %v1091 = vpack.c.bf16 %v989, %v988
  %v1092 = vpack.c.bf16 %v991, %v990
  %v1093 = vpack.c.bf16 %v993, %v992
  %v1094 = vpack.c.bf16 %v995, %v994
  %v1095 = vpack.c.bf16 %v997, %v996
  %v1096 = vpack.c.bf16 %v999, %v998
  %v1097 = vpack.c.bf16 %v1001, %v1000
  %v1098 = vpack.c.bf16 %v1003, %v1002
  %v1099 = vpack.c.bf16 %v1005, %v1004
  %v1100 = vpack.c.bf16 %v1007, %v1006
  %v1101 = vpack.c.bf16 %v1009, %v1008
  %v1102 = vpack.c.bf16 %v1011, %v1010
  %v1103 = vpack.c.bf16 %v1013, %v1012
  %v1104 = vpack.c.bf16 %v1015, %v1014
  %v1105 = vpack.c.bf16 %v1017, %v1016
  %v1106 = vpack.c.bf16 %v1019, %v1018
  %v1107 = vpack.c.bf16 %v1021, %v1020
  %v1108 = vpack.c.bf16 %v1023, %v1022
  %v1109 = vpack.c.bf16 %v1025, %v1024
  %v1110 = vpack.c.bf16 %v1027, %v1026
  %v1111 = vpack.c.bf16 %v1029, %v1028
  %v1112 = vpack.c.bf16 %v1031, %v1030
  %v1113 = vpack.c.bf16 %v1033, %v1032
  %v1114 = vpack.c.bf16 %v1035, %v1034
  %v1115 = vpack.c.bf16 %v1037, %v1036
  %v1116 = vpack.c.bf16 %v1039, %v1038
  %v1117 = vpack.c.bf16 %v1041, %v1040
  %v1118 = vpack.c.bf16 %v1043, %v1042
  %v1119 = vpack.c.bf16 %v1045, %v1044
  %v1120 = vpack.c.bf16 %v1047, %v1046
  %v1121 = vpack.c.bf16 %v1049, %v1048
  %v1122 = vpack.c.bf16 %v1051, %v1050
  %v1123 = vpack.c.bf16 %v1053, %v1052
  %v1124 = vpack.c.bf16 %v1055, %v1054
  %v1125 = vpack.c.bf16 %v1057, %v1056
  %v1126 = vpack.c.bf16 %v1059, %v1058
  %v1127 = vpack.c.bf16 %v1061, %v1060
  %v1128 = vpack.c.bf16 %v1063, %v1062
  %v1129 = vpack.c.bf16 %v1065, %v1064
  %v1130 = vld [vmem:[%s3] sm:$0xf]
  %v1131 = vld [vmem:[%s3 + $0x4] sm:$0xf]
  %v1132 = vld [vmem:[%s3 + $0x8] sm:$0xf]
  %v1133 = vld [vmem:[%s3 + $0xc] sm:$0xf]
  %v1134 = vld [vmem:[%s3 + $0x10] sm:$0xf]
  %v1135 = vld [vmem:[%s3 + $0x14] sm:$0xf]
  %v1136 = vld [vmem:[%s3 + $0x18] sm:$0xf]
  %v1137 = vld [vmem:[%s3 + $0x1c] sm:$0xf]
  %v1138 = vld [vmem:[%s4] sm:$0x1]
  %v1140 = vperm.slane %v1138, 0
  %v1150 = vunpack.c.l.b16 %v1130
  %v1151 = vunpack.c.l.b16 %v1131
  %v1152 = vunpack.c.l.b16 %v1132
  %v1153 = vunpack.c.l.b16 %v1133
  %v1154 = vunpack.c.l.b16 %v1134
  %v1155 = vunpack.c.l.b16 %v1135
  %v1156 = vunpack.c.l.b16 %v1136
  %v1157 = vunpack.c.l.b16 %v1137
  %v1158 = vpack.c.b16 %v1151, %v1150
  %v1159 = vpack.c.b16 %v1153, %v1152
  %v1160 = vpack.c.b16 %v1155, %v1154
  %v1161 = vpack.c.b16 %v1157, %v1156
  %vm1166 = vcmask 523264
  %v1168 = vsel %vm1166, %v1066, 0
  %v1171 = vsel %vm1166, %v1067, 0
  %v1174 = vsel %vm1166, %v1068, 0
  %v1177 = vsel %vm1166, %v1069, 0
  %v1180 = vsel %vm1166, %v1070, 0
  %v1183 = vsel %vm1166, %v1071, 0
  %v1186 = vsel %vm1166, %v1072, 0
  %v1189 = vsel %vm1166, %v1073, 0
  %v1192 = vsel %vm1166, %v1074, 0
  %v1195 = vsel %vm1166, %v1075, 0
  %v1198 = vsel %vm1166, %v1076, 0
  %v1201 = vsel %vm1166, %v1077, 0
  %v1204 = vsel %vm1166, %v1078, 0
  %v1207 = vsel %vm1166, %v1079, 0
  %v1210 = vsel %vm1166, %v1080, 0
  %v1213 = vsel %vm1166, %v1081, 0
  %v1216 = vsel %vm1166, %v1082, 0
  %v1219 = vsel %vm1166, %v1083, 0
  %v1222 = vsel %vm1166, %v1084, 0
  %v1225 = vsel %vm1166, %v1085, 0
  %v1228 = vsel %vm1166, %v1086, 0
  %v1231 = vsel %vm1166, %v1087, 0
  %v1234 = vsel %vm1166, %v1088, 0
  %v1237 = vsel %vm1166, %v1089, 0
  %v1240 = vsel %vm1166, %v1090, 0
  %v1243 = vsel %vm1166, %v1091, 0
  %v1246 = vsel %vm1166, %v1092, 0
  %v1249 = vsel %vm1166, %v1093, 0
  %v1252 = vsel %vm1166, %v1094, 0
  %v1255 = vsel %vm1166, %v1095, 0
  %v1258 = vsel %vm1166, %v1096, 0
  %v1261 = vsel %vm1166, %v1097, 0
  %v1264 = vsel %vm1166, %v1098, 0
  %v1267 = vsel %vm1166, %v1099, 0
  %v1270 = vsel %vm1166, %v1100, 0
  %v1273 = vsel %vm1166, %v1101, 0
  %v1276 = vsel %vm1166, %v1102, 0
  %v1279 = vsel %vm1166, %v1103, 0
  %v1282 = vsel %vm1166, %v1104, 0
  %v1285 = vsel %vm1166, %v1105, 0
  %v1288 = vsel %vm1166, %v1106, 0
  %v1291 = vsel %vm1166, %v1107, 0
  %v1294 = vsel %vm1166, %v1108, 0
  %v1297 = vsel %vm1166, %v1109, 0
  %v1300 = vsel %vm1166, %v1110, 0
  %v1303 = vsel %vm1166, %v1111, 0
  %v1306 = vsel %vm1166, %v1112, 0
  %v1309 = vsel %vm1166, %v1113, 0
  %v1312 = vsel %vm1166, %v1114, 0
  %v1315 = vsel %vm1166, %v1115, 0
  %v1318 = vsel %vm1166, %v1116, 0
  %v1321 = vsel %vm1166, %v1117, 0
  %v1324 = vsel %vm1166, %v1118, 0
  %v1327 = vsel %vm1166, %v1119, 0
  %v1330 = vsel %vm1166, %v1120, 0
  %v1333 = vsel %vm1166, %v1121, 0
  %v1336 = vsel %vm1166, %v1122, 0
  %v1339 = vsel %vm1166, %v1123, 0
  %v1342 = vsel %vm1166, %v1124, 0
  %v1345 = vsel %vm1166, %v1125, 0
  %v1348 = vsel %vm1166, %v1126, 0
  %v1351 = vsel %vm1166, %v1127, 0
  %v1354 = vsel %vm1166, %v1128, 0
  %v1357 = vsel %vm1166, %v1129, 0
  %1359 = vmatpush.bf16.msra.mxu0 0
  %1360 = vmatpush.bf16.msra.mxu0 0
  %1361 = vmatpush.bf16.msra.mxu0 0
  %1362 = vmatpush.bf16.msra.mxu0 0
  %1363 = vmatpush.bf16.msra.mxu0 %v1161
  %1364 = vmatpush.bf16.msra.mxu0 %v1160
  %1365 = vmatpush.bf16.msra.mxu0 %v1159
  %1366 = vmatpush.bf16.msra.mxu0 %v1158
  %1367 = vmatmul.bf16.gmra.mxu0 %v1168
  %v1368 = vpop.f32.mrf.mxu0
  %v1369 = vadd.f32 %v1140, %v1368
  %v1370 = vpop.f32.mrf.mxu0
  %v1371 = vadd.f32 %v1140, %v1370
  %1372 = vmatmul.bf16.gmra.mxu0 %v1171
  %v1373 = vpop.f32.mrf.mxu0
  %v1374 = vadd.f32 %v1140, %v1373
  %v1375 = vpop.f32.mrf.mxu0
  %v1376 = vadd.f32 %v1140, %v1375
  %1377 = vmatmul.bf16.gmra.mxu0 %v1174
  %v1378 = vpop.f32.mrf.mxu0
  %v1379 = vadd.f32 %v1140, %v1378
  %v1380 = vpop.f32.mrf.mxu0
  %v1381 = vadd.f32 %v1140, %v1380
  %1382 = vmatmul.bf16.gmra.mxu0 %v1177
  %v1383 = vpop.f32.mrf.mxu0
  %v1384 = vadd.f32 %v1140, %v1383
  %v1385 = vpop.f32.mrf.mxu0
  %v1386 = vadd.f32 %v1140, %v1385
  %1387 = vmatmul.bf16.gmra.mxu0 %v1180
  %v1388 = vpop.f32.mrf.mxu0
  %v1389 = vadd.f32 %v1140, %v1388
  %v1390 = vpop.f32.mrf.mxu0
  %v1391 = vadd.f32 %v1140, %v1390
  %1392 = vmatmul.bf16.gmra.mxu0 %v1183
  %v1393 = vpop.f32.mrf.mxu0
  %v1394 = vadd.f32 %v1140, %v1393
  %v1395 = vpop.f32.mrf.mxu0
  %v1396 = vadd.f32 %v1140, %v1395
  %1397 = vmatmul.bf16.gmra.mxu0 %v1186
  %v1398 = vpop.f32.mrf.mxu0
  %v1399 = vadd.f32 %v1140, %v1398
  %v1400 = vpop.f32.mrf.mxu0
  %v1401 = vadd.f32 %v1140, %v1400
  %1402 = vmatmul.bf16.gmra.mxu0 %v1189
  %v1403 = vpop.f32.mrf.mxu0
  %v1404 = vadd.f32 %v1140, %v1403
  %v1405 = vpop.f32.mrf.mxu0
  %v1406 = vadd.f32 %v1140, %v1405
  %1407 = vmatmul.bf16.gmra.mxu0 %v1192
  %v1408 = vpop.f32.mrf.mxu0
  %v1409 = vadd.f32 %v1140, %v1408
  %v1410 = vpop.f32.mrf.mxu0
  %v1411 = vadd.f32 %v1140, %v1410
  %1412 = vmatmul.bf16.gmra.mxu0 %v1195
  %v1413 = vpop.f32.mrf.mxu0
  %v1414 = vadd.f32 %v1140, %v1413
  %v1415 = vpop.f32.mrf.mxu0
  %v1416 = vadd.f32 %v1140, %v1415
  %1417 = vmatmul.bf16.gmra.mxu0 %v1198
  %v1418 = vpop.f32.mrf.mxu0
  %v1419 = vadd.f32 %v1140, %v1418
  %v1420 = vpop.f32.mrf.mxu0
  %v1421 = vadd.f32 %v1140, %v1420
  %1422 = vmatmul.bf16.gmra.mxu0 %v1201
  %v1423 = vpop.f32.mrf.mxu0
  %v1424 = vadd.f32 %v1140, %v1423
  %v1425 = vpop.f32.mrf.mxu0
  %v1426 = vadd.f32 %v1140, %v1425
  %1427 = vmatmul.bf16.gmra.mxu0 %v1204
  %v1428 = vpop.f32.mrf.mxu0
  %v1429 = vadd.f32 %v1140, %v1428
  %v1430 = vpop.f32.mrf.mxu0
  %v1431 = vadd.f32 %v1140, %v1430
  %1432 = vmatmul.bf16.gmra.mxu0 %v1207
  %v1433 = vpop.f32.mrf.mxu0
  %v1434 = vadd.f32 %v1140, %v1433
  %v1435 = vpop.f32.mrf.mxu0
  %v1436 = vadd.f32 %v1140, %v1435
  %1437 = vmatmul.bf16.gmra.mxu0 %v1210
  %v1438 = vpop.f32.mrf.mxu0
  %v1439 = vadd.f32 %v1140, %v1438
  %v1440 = vpop.f32.mrf.mxu0
  %v1441 = vadd.f32 %v1140, %v1440
  %1442 = vmatmul.bf16.gmra.mxu0 %v1213
  %v1443 = vpop.f32.mrf.mxu0
  %v1444 = vadd.f32 %v1140, %v1443
  %v1445 = vpop.f32.mrf.mxu0
  %v1446 = vadd.f32 %v1140, %v1445
  %1447 = vmatmul.bf16.gmra.mxu0 %v1216
  %v1448 = vpop.f32.mrf.mxu0
  %v1449 = vadd.f32 %v1140, %v1448
  %v1450 = vpop.f32.mrf.mxu0
  %v1451 = vadd.f32 %v1140, %v1450
  %1452 = vmatmul.bf16.gmra.mxu0 %v1219
  %v1453 = vpop.f32.mrf.mxu0
  %v1454 = vadd.f32 %v1140, %v1453
  %v1455 = vpop.f32.mrf.mxu0
  %v1456 = vadd.f32 %v1140, %v1455
  %1457 = vmatmul.bf16.gmra.mxu0 %v1222
  %v1458 = vpop.f32.mrf.mxu0
  %v1459 = vadd.f32 %v1140, %v1458
  %v1460 = vpop.f32.mrf.mxu0
  %v1461 = vadd.f32 %v1140, %v1460
  %1462 = vmatmul.bf16.gmra.mxu0 %v1225
  %v1463 = vpop.f32.mrf.mxu0
  %v1464 = vadd.f32 %v1140, %v1463
  %v1465 = vpop.f32.mrf.mxu0
  %v1466 = vadd.f32 %v1140, %v1465
  %1467 = vmatmul.bf16.gmra.mxu0 %v1228
  %v1468 = vpop.f32.mrf.mxu0
  %v1469 = vadd.f32 %v1140, %v1468
  %v1470 = vpop.f32.mrf.mxu0
  %v1471 = vadd.f32 %v1140, %v1470
  %1472 = vmatmul.bf16.gmra.mxu0 %v1231
  %v1473 = vpop.f32.mrf.mxu0
  %v1474 = vadd.f32 %v1140, %v1473
  %v1475 = vpop.f32.mrf.mxu0
  %v1476 = vadd.f32 %v1140, %v1475
  %1477 = vmatmul.bf16.gmra.mxu0 %v1234
  %v1478 = vpop.f32.mrf.mxu0
  %v1479 = vadd.f32 %v1140, %v1478
  %v1480 = vpop.f32.mrf.mxu0
  %v1481 = vadd.f32 %v1140, %v1480
  %1482 = vmatmul.bf16.gmra.mxu0 %v1237
  %v1483 = vpop.f32.mrf.mxu0
  %v1484 = vadd.f32 %v1140, %v1483
  %v1485 = vpop.f32.mrf.mxu0
  %v1486 = vadd.f32 %v1140, %v1485
  %1487 = vmatmul.bf16.gmra.mxu0 %v1240
  %v1488 = vpop.f32.mrf.mxu0
  %v1489 = vadd.f32 %v1140, %v1488
  %v1490 = vpop.f32.mrf.mxu0
  %v1491 = vadd.f32 %v1140, %v1490
  %1492 = vmatmul.bf16.gmra.mxu0 %v1243
  %v1493 = vpop.f32.mrf.mxu0
  %v1494 = vadd.f32 %v1140, %v1493
  %v1495 = vpop.f32.mrf.mxu0
  %v1496 = vadd.f32 %v1140, %v1495
  %1497 = vmatmul.bf16.gmra.mxu0 %v1246
  %v1498 = vpop.f32.mrf.mxu0
  %v1499 = vadd.f32 %v1140, %v1498
  %v1500 = vpop.f32.mrf.mxu0
  %v1501 = vadd.f32 %v1140, %v1500
  %1502 = vmatmul.bf16.gmra.mxu0 %v1249
  %v1503 = vpop.f32.mrf.mxu0
  %v1504 = vadd.f32 %v1140, %v1503
  %v1505 = vpop.f32.mrf.mxu0
  %v1506 = vadd.f32 %v1140, %v1505
  %1507 = vmatmul.bf16.gmra.mxu0 %v1252
  %v1508 = vpop.f32.mrf.mxu0
  %v1509 = vadd.f32 %v1140, %v1508
  %v1510 = vpop.f32.mrf.mxu0
  %v1511 = vadd.f32 %v1140, %v1510
  %1512 = vmatmul.bf16.gmra.mxu0 %v1255
  %v1513 = vpop.f32.mrf.mxu0
  %v1514 = vadd.f32 %v1140, %v1513
  %v1515 = vpop.f32.mrf.mxu0
  %v1516 = vadd.f32 %v1140, %v1515
  %1517 = vmatmul.bf16.gmra.mxu0 %v1258
  %v1518 = vpop.f32.mrf.mxu0
  %v1519 = vadd.f32 %v1140, %v1518
  %v1520 = vpop.f32.mrf.mxu0
  %v1521 = vadd.f32 %v1140, %v1520
  %1522 = vmatmul.bf16.gmra.mxu0 %v1261
  %v1523 = vpop.f32.mrf.mxu0
  %v1524 = vadd.f32 %v1140, %v1523
  %v1525 = vpop.f32.mrf.mxu0
  %v1526 = vadd.f32 %v1140, %v1525
  %1527 = vmatmul.bf16.gmra.mxu0 %v1264
  %v1528 = vpop.f32.mrf.mxu0
  %v1529 = vadd.f32 %v1140, %v1528
  %v1530 = vpop.f32.mrf.mxu0
  %v1531 = vadd.f32 %v1140, %v1530
  %1532 = vmatmul.bf16.gmra.mxu0 %v1267
  %v1533 = vpop.f32.mrf.mxu0
  %v1534 = vadd.f32 %v1140, %v1533
  %v1535 = vpop.f32.mrf.mxu0
  %v1536 = vadd.f32 %v1140, %v1535
  %1537 = vmatmul.bf16.gmra.mxu0 %v1270
  %v1538 = vpop.f32.mrf.mxu0
  %v1539 = vadd.f32 %v1140, %v1538
  %v1540 = vpop.f32.mrf.mxu0
  %v1541 = vadd.f32 %v1140, %v1540
  %1542 = vmatmul.bf16.gmra.mxu0 %v1273
  %v1543 = vpop.f32.mrf.mxu0
  %v1544 = vadd.f32 %v1140, %v1543
  %v1545 = vpop.f32.mrf.mxu0
  %v1546 = vadd.f32 %v1140, %v1545
  %1547 = vmatmul.bf16.gmra.mxu0 %v1276
  %v1548 = vpop.f32.mrf.mxu0
  %v1549 = vadd.f32 %v1140, %v1548
  %v1550 = vpop.f32.mrf.mxu0
  %v1551 = vadd.f32 %v1140, %v1550
  %1552 = vmatmul.bf16.gmra.mxu0 %v1279
  %v1553 = vpop.f32.mrf.mxu0
  %v1554 = vadd.f32 %v1140, %v1553
  %v1555 = vpop.f32.mrf.mxu0
  %v1556 = vadd.f32 %v1140, %v1555
  %1557 = vmatmul.bf16.gmra.mxu0 %v1282
  %v1558 = vpop.f32.mrf.mxu0
  %v1559 = vadd.f32 %v1140, %v1558
  %v1560 = vpop.f32.mrf.mxu0
  %v1561 = vadd.f32 %v1140, %v1560
  %1562 = vmatmul.bf16.gmra.mxu0 %v1285
  %v1563 = vpop.f32.mrf.mxu0
  %v1564 = vadd.f32 %v1140, %v1563
  %v1565 = vpop.f32.mrf.mxu0
  %v1566 = vadd.f32 %v1140, %v1565
  %1567 = vmatmul.bf16.gmra.mxu0 %v1288
  %v1568 = vpop.f32.mrf.mxu0
  %v1569 = vadd.f32 %v1140, %v1568
  %v1570 = vpop.f32.mrf.mxu0
  %v1571 = vadd.f32 %v1140, %v1570
  %1572 = vmatmul.bf16.gmra.mxu0 %v1291
  %v1573 = vpop.f32.mrf.mxu0
  %v1574 = vadd.f32 %v1140, %v1573
  %v1575 = vpop.f32.mrf.mxu0
  %v1576 = vadd.f32 %v1140, %v1575
  %1577 = vmatmul.bf16.gmra.mxu0 %v1294
  %v1578 = vpop.f32.mrf.mxu0
  %v1579 = vadd.f32 %v1140, %v1578
  %v1580 = vpop.f32.mrf.mxu0
  %v1581 = vadd.f32 %v1140, %v1580
  %1582 = vmatmul.bf16.gmra.mxu0 %v1297
  %v1583 = vpop.f32.mrf.mxu0
  %v1584 = vadd.f32 %v1140, %v1583
  %v1585 = vpop.f32.mrf.mxu0
  %v1586 = vadd.f32 %v1140, %v1585
  %1587 = vmatmul.bf16.gmra.mxu0 %v1300
  %v1588 = vpop.f32.mrf.mxu0
  %v1589 = vadd.f32 %v1140, %v1588
  %v1590 = vpop.f32.mrf.mxu0
  %v1591 = vadd.f32 %v1140, %v1590
  %1592 = vmatmul.bf16.gmra.mxu0 %v1303
  %v1593 = vpop.f32.mrf.mxu0
  %v1594 = vadd.f32 %v1140, %v1593
  %v1595 = vpop.f32.mrf.mxu0
  %v1596 = vadd.f32 %v1140, %v1595
  %1597 = vmatmul.bf16.gmra.mxu0 %v1306
  %v1598 = vpop.f32.mrf.mxu0
  %v1599 = vadd.f32 %v1140, %v1598
  %v1600 = vpop.f32.mrf.mxu0
  %v1601 = vadd.f32 %v1140, %v1600
  %1602 = vmatmul.bf16.gmra.mxu0 %v1309
  %v1603 = vpop.f32.mrf.mxu0
  %v1604 = vadd.f32 %v1140, %v1603
  %v1605 = vpop.f32.mrf.mxu0
  %v1606 = vadd.f32 %v1140, %v1605
  %1607 = vmatmul.bf16.gmra.mxu0 %v1312
  %v1608 = vpop.f32.mrf.mxu0
  %v1609 = vadd.f32 %v1140, %v1608
  %v1610 = vpop.f32.mrf.mxu0
  %v1611 = vadd.f32 %v1140, %v1610
  %1612 = vmatmul.bf16.gmra.mxu0 %v1315
  %v1613 = vpop.f32.mrf.mxu0
  %v1614 = vadd.f32 %v1140, %v1613
  %v1615 = vpop.f32.mrf.mxu0
  %v1616 = vadd.f32 %v1140, %v1615
  %1617 = vmatmul.bf16.gmra.mxu0 %v1318
  %v1618 = vpop.f32.mrf.mxu0
  %v1619 = vadd.f32 %v1140, %v1618
  %v1620 = vpop.f32.mrf.mxu0
  %v1621 = vadd.f32 %v1140, %v1620
  %1622 = vmatmul.bf16.gmra.mxu0 %v1321
  %v1623 = vpop.f32.mrf.mxu0
  %v1624 = vadd.f32 %v1140, %v1623
  %v1625 = vpop.f32.mrf.mxu0
  %v1626 = vadd.f32 %v1140, %v1625
  %1627 = vmatmul.bf16.gmra.mxu0 %v1324
  %v1628 = vpop.f32.mrf.mxu0
  %v1629 = vadd.f32 %v1140, %v1628
  %v1630 = vpop.f32.mrf.mxu0
  %v1631 = vadd.f32 %v1140, %v1630
  %1632 = vmatmul.bf16.gmra.mxu0 %v1327
  %v1633 = vpop.f32.mrf.mxu0
  %v1634 = vadd.f32 %v1140, %v1633
  %v1635 = vpop.f32.mrf.mxu0
  %v1636 = vadd.f32 %v1140, %v1635
  %1637 = vmatmul.bf16.gmra.mxu0 %v1330
  %v1638 = vpop.f32.mrf.mxu0
  %v1639 = vadd.f32 %v1140, %v1638
  %v1640 = vpop.f32.mrf.mxu0
  %v1641 = vadd.f32 %v1140, %v1640
  %1642 = vmatmul.bf16.gmra.mxu0 %v1333
  %v1643 = vpop.f32.mrf.mxu0
  %v1644 = vadd.f32 %v1140, %v1643
  %v1645 = vpop.f32.mrf.mxu0
  %v1646 = vadd.f32 %v1140, %v1645
  %1647 = vmatmul.bf16.gmra.mxu0 %v1336
  %v1648 = vpop.f32.mrf.mxu0
  %v1649 = vadd.f32 %v1140, %v1648
  %v1650 = vpop.f32.mrf.mxu0
  %v1651 = vadd.f32 %v1140, %v1650
  %1652 = vmatmul.bf16.gmra.mxu0 %v1339
  %v1653 = vpop.f32.mrf.mxu0
  %v1654 = vadd.f32 %v1140, %v1653
  %v1655 = vpop.f32.mrf.mxu0
  %v1656 = vadd.f32 %v1140, %v1655
  %1657 = vmatmul.bf16.gmra.mxu0 %v1342
  %v1658 = vpop.f32.mrf.mxu0
  %v1659 = vadd.f32 %v1140, %v1658
  %v1660 = vpop.f32.mrf.mxu0
  %v1661 = vadd.f32 %v1140, %v1660
  %1662 = vmatmul.bf16.gmra.mxu0 %v1345
  %v1663 = vpop.f32.mrf.mxu0
  %v1664 = vadd.f32 %v1140, %v1663
  %v1665 = vpop.f32.mrf.mxu0
  %v1666 = vadd.f32 %v1140, %v1665
  %1667 = vmatmul.bf16.gmra.mxu0 %v1348
  %v1668 = vpop.f32.mrf.mxu0
  %v1669 = vadd.f32 %v1140, %v1668
  %v1670 = vpop.f32.mrf.mxu0
  %v1671 = vadd.f32 %v1140, %v1670
  %1672 = vmatmul.bf16.gmra.mxu0 %v1351
  %v1673 = vpop.f32.mrf.mxu0
  %v1674 = vadd.f32 %v1140, %v1673
  %v1675 = vpop.f32.mrf.mxu0
  %v1676 = vadd.f32 %v1140, %v1675
  %1677 = vmatmul.bf16.gmra.mxu0 %v1354
  %v1678 = vpop.f32.mrf.mxu0
  %v1679 = vadd.f32 %v1140, %v1678
  %v1680 = vpop.f32.mrf.mxu0
  %v1681 = vadd.f32 %v1140, %v1680
  %1682 = vmatmul.bf16.gmra.mxu0 %v1357
  %v1683 = vpop.f32.mrf.mxu0
  %v1684 = vadd.f32 %v1140, %v1683
  %v1685 = vpop.f32.mrf.mxu0
  %v1686 = vadd.f32 %v1140, %v1685
  %1687 = vdwg.mxu0
  %v1688 = vmax.f32 %v1369, 0.0
  %v1689 = vmax.f32 %v1371, 0.0
  %v1690 = vmax.f32 %v1374, 0.0
  %v1691 = vmax.f32 %v1376, 0.0
  %v1692 = vmax.f32 %v1379, 0.0
  %v1693 = vmax.f32 %v1381, 0.0
  %v1694 = vmax.f32 %v1384, 0.0
  %v1695 = vmax.f32 %v1386, 0.0
  %v1696 = vmax.f32 %v1389, 0.0
  %v1697 = vmax.f32 %v1391, 0.0
  %v1698 = vmax.f32 %v1394, 0.0
  %v1699 = vmax.f32 %v1396, 0.0
  %v1700 = vmax.f32 %v1399, 0.0
  %v1701 = vmax.f32 %v1401, 0.0
  %v1702 = vmax.f32 %v1404, 0.0
  %v1703 = vmax.f32 %v1406, 0.0
  %v1704 = vmax.f32 %v1409, 0.0
  %v1705 = vmax.f32 %v1411, 0.0
  %v1706 = vmax.f32 %v1414, 0.0
  %v1707 = vmax.f32 %v1416, 0.0
  %v1708 = vmax.f32 %v1419, 0.0
  %v1709 = vmax.f32 %v1421, 0.0
  %v1710 = vmax.f32 %v1424, 0.0
  %v1711 = vmax.f32 %v1426, 0.0
  %v1712 = vmax.f32 %v1429, 0.0
  %v1713 = vmax.f32 %v1431, 0.0
  %v1714 = vmax.f32 %v1434, 0.0
  %v1715 = vmax.f32 %v1436, 0.0
  %v1716 = vmax.f32 %v1439, 0.0
  %v1717 = vmax.f32 %v1441, 0.0
  %v1718 = vmax.f32 %v1444, 0.0
  %v1719 = vmax.f32 %v1446, 0.0
  %v1720 = vmax.f32 %v1449, 0.0
  %v1721 = vmax.f32 %v1451, 0.0
  %v1722 = vmax.f32 %v1454, 0.0
  %v1723 = vmax.f32 %v1456, 0.0
  %v1724 = vmax.f32 %v1459, 0.0
  %v1725 = vmax.f32 %v1461, 0.0
  %v1726 = vmax.f32 %v1464, 0.0
  %v1727 = vmax.f32 %v1466, 0.0
  %v1728 = vmax.f32 %v1469, 0.0
  %v1729 = vmax.f32 %v1471, 0.0
  %v1730 = vmax.f32 %v1474, 0.0
  %v1731 = vmax.f32 %v1476, 0.0
  %v1732 = vmax.f32 %v1479, 0.0
  %v1733 = vmax.f32 %v1481, 0.0
  %v1734 = vmax.f32 %v1484, 0.0
  %v1735 = vmax.f32 %v1486, 0.0
  %v1736 = vmax.f32 %v1489, 0.0
  %v1737 = vmax.f32 %v1491, 0.0
  %v1738 = vmax.f32 %v1494, 0.0
  %v1739 = vmax.f32 %v1496, 0.0
  %v1740 = vmax.f32 %v1499, 0.0
  %v1741 = vmax.f32 %v1501, 0.0
  %v1742 = vmax.f32 %v1504, 0.0
  %v1743 = vmax.f32 %v1506, 0.0
  %v1744 = vmax.f32 %v1509, 0.0
  %v1745 = vmax.f32 %v1511, 0.0
  %v1746 = vmax.f32 %v1514, 0.0
  %v1747 = vmax.f32 %v1516, 0.0
  %v1748 = vmax.f32 %v1519, 0.0
  %v1749 = vmax.f32 %v1521, 0.0
  %v1750 = vmax.f32 %v1524, 0.0
  %v1751 = vmax.f32 %v1526, 0.0
  %v1752 = vmax.f32 %v1529, 0.0
  %v1753 = vmax.f32 %v1531, 0.0
  %v1754 = vmax.f32 %v1534, 0.0
  %v1755 = vmax.f32 %v1536, 0.0
  %v1756 = vmax.f32 %v1539, 0.0
  %v1757 = vmax.f32 %v1541, 0.0
  %v1758 = vmax.f32 %v1544, 0.0
  %v1759 = vmax.f32 %v1546, 0.0
  %v1760 = vmax.f32 %v1549, 0.0
  %v1761 = vmax.f32 %v1551, 0.0
  %v1762 = vmax.f32 %v1554, 0.0
  %v1763 = vmax.f32 %v1556, 0.0
  %v1764 = vmax.f32 %v1559, 0.0
  %v1765 = vmax.f32 %v1561, 0.0
  %v1766 = vmax.f32 %v1564, 0.0
  %v1767 = vmax.f32 %v1566, 0.0
  %v1768 = vmax.f32 %v1569, 0.0
  %v1769 = vmax.f32 %v1571, 0.0
  %v1770 = vmax.f32 %v1574, 0.0
  %v1771 = vmax.f32 %v1576, 0.0
  %v1772 = vmax.f32 %v1579, 0.0
  %v1773 = vmax.f32 %v1581, 0.0
  %v1774 = vmax.f32 %v1584, 0.0
  %v1775 = vmax.f32 %v1586, 0.0
  %v1776 = vmax.f32 %v1589, 0.0
  %v1777 = vmax.f32 %v1591, 0.0
  %v1778 = vmax.f32 %v1594, 0.0
  %v1779 = vmax.f32 %v1596, 0.0
  %v1780 = vmax.f32 %v1599, 0.0
  %v1781 = vmax.f32 %v1601, 0.0
  %v1782 = vmax.f32 %v1604, 0.0
  %v1783 = vmax.f32 %v1606, 0.0
  %v1784 = vmax.f32 %v1609, 0.0
  %v1785 = vmax.f32 %v1611, 0.0
  %v1786 = vmax.f32 %v1614, 0.0
  %v1787 = vmax.f32 %v1616, 0.0
  %v1788 = vmax.f32 %v1619, 0.0
  %v1789 = vmax.f32 %v1621, 0.0
  %v1790 = vmax.f32 %v1624, 0.0
  %v1791 = vmax.f32 %v1626, 0.0
  %v1792 = vmax.f32 %v1629, 0.0
  %v1793 = vmax.f32 %v1631, 0.0
  %v1794 = vmax.f32 %v1634, 0.0
  %v1795 = vmax.f32 %v1636, 0.0
  %v1796 = vmax.f32 %v1639, 0.0
  %v1797 = vmax.f32 %v1641, 0.0
  %v1798 = vmax.f32 %v1644, 0.0
  %v1799 = vmax.f32 %v1646, 0.0
  %v1800 = vmax.f32 %v1649, 0.0
  %v1801 = vmax.f32 %v1651, 0.0
  %v1802 = vmax.f32 %v1654, 0.0
  %v1803 = vmax.f32 %v1656, 0.0
  %v1804 = vmax.f32 %v1659, 0.0
  %v1805 = vmax.f32 %v1661, 0.0
  %v1806 = vmax.f32 %v1664, 0.0
  %v1807 = vmax.f32 %v1666, 0.0
  %v1808 = vmax.f32 %v1669, 0.0
  %v1809 = vmax.f32 %v1671, 0.0
  %v1810 = vmax.f32 %v1674, 0.0
  %v1811 = vmax.f32 %v1676, 0.0
  %v1812 = vmax.f32 %v1679, 0.0
  %v1813 = vmax.f32 %v1681, 0.0
  %v1814 = vmax.f32 %v1684, 0.0
  %v1815 = vmax.f32 %v1686, 0.0
  %v1816 = vld [vmem:[%s5] sm:$0x1]
  %v1818 = vperm.slane %v1816, 0
  %v1820 = vmul.f32 %v1688, %v1818
  %v1821 = vmul.f32 %v1689, %v1818
  %v1822 = vmul.f32 %v1690, %v1818
  %v1823 = vmul.f32 %v1691, %v1818
  %v1824 = vmul.f32 %v1692, %v1818
  %v1825 = vmul.f32 %v1693, %v1818
  %v1826 = vmul.f32 %v1694, %v1818
  %v1827 = vmul.f32 %v1695, %v1818
  %v1828 = vmul.f32 %v1696, %v1818
  %v1829 = vmul.f32 %v1697, %v1818
  %v1830 = vmul.f32 %v1698, %v1818
  %v1831 = vmul.f32 %v1699, %v1818
  %v1832 = vmul.f32 %v1700, %v1818
  %v1833 = vmul.f32 %v1701, %v1818
  %v1834 = vmul.f32 %v1702, %v1818
  %v1835 = vmul.f32 %v1703, %v1818
  %v1836 = vmul.f32 %v1704, %v1818
  %v1837 = vmul.f32 %v1705, %v1818
  %v1838 = vmul.f32 %v1706, %v1818
  %v1839 = vmul.f32 %v1707, %v1818
  %v1840 = vmul.f32 %v1708, %v1818
  %v1841 = vmul.f32 %v1709, %v1818
  %v1842 = vmul.f32 %v1710, %v1818
  %v1843 = vmul.f32 %v1711, %v1818
  %v1844 = vmul.f32 %v1712, %v1818
  %v1845 = vmul.f32 %v1713, %v1818
  %v1846 = vmul.f32 %v1714, %v1818
  %v1847 = vmul.f32 %v1715, %v1818
  %v1848 = vmul.f32 %v1716, %v1818
  %v1849 = vmul.f32 %v1717, %v1818
  %v1850 = vmul.f32 %v1718, %v1818
  %v1851 = vmul.f32 %v1719, %v1818
  %v1852 = vmul.f32 %v1720, %v1818
  %v1853 = vmul.f32 %v1721, %v1818
  %v1854 = vmul.f32 %v1722, %v1818
  %v1855 = vmul.f32 %v1723, %v1818
  %v1856 = vmul.f32 %v1724, %v1818
  %v1857 = vmul.f32 %v1725, %v1818
  %v1858 = vmul.f32 %v1726, %v1818
  %v1859 = vmul.f32 %v1727, %v1818
  %v1860 = vmul.f32 %v1728, %v1818
  %v1861 = vmul.f32 %v1729, %v1818
  %v1862 = vmul.f32 %v1730, %v1818
  %v1863 = vmul.f32 %v1731, %v1818
  %v1864 = vmul.f32 %v1732, %v1818
  %v1865 = vmul.f32 %v1733, %v1818
  %v1866 = vmul.f32 %v1734, %v1818
  %v1867 = vmul.f32 %v1735, %v1818
  %v1868 = vmul.f32 %v1736, %v1818
  %v1869 = vmul.f32 %v1737, %v1818
  %v1870 = vmul.f32 %v1738, %v1818
  %v1871 = vmul.f32 %v1739, %v1818
  %v1872 = vmul.f32 %v1740, %v1818
  %v1873 = vmul.f32 %v1741, %v1818
  %v1874 = vmul.f32 %v1742, %v1818
  %v1875 = vmul.f32 %v1743, %v1818
  %v1876 = vmul.f32 %v1744, %v1818
  %v1877 = vmul.f32 %v1745, %v1818
  %v1878 = vmul.f32 %v1746, %v1818
  %v1879 = vmul.f32 %v1747, %v1818
  %v1880 = vmul.f32 %v1748, %v1818
  %v1881 = vmul.f32 %v1749, %v1818
  %v1882 = vmul.f32 %v1750, %v1818
  %v1883 = vmul.f32 %v1751, %v1818
  %v1884 = vmul.f32 %v1752, %v1818
  %v1885 = vmul.f32 %v1753, %v1818
  %v1886 = vmul.f32 %v1754, %v1818
  %v1887 = vmul.f32 %v1755, %v1818
  %v1888 = vmul.f32 %v1756, %v1818
  %v1889 = vmul.f32 %v1757, %v1818
  %v1890 = vmul.f32 %v1758, %v1818
  %v1891 = vmul.f32 %v1759, %v1818
  %v1892 = vmul.f32 %v1760, %v1818
  %v1893 = vmul.f32 %v1761, %v1818
  %v1894 = vmul.f32 %v1762, %v1818
  %v1895 = vmul.f32 %v1763, %v1818
  %v1896 = vmul.f32 %v1764, %v1818
  %v1897 = vmul.f32 %v1765, %v1818
  %v1898 = vmul.f32 %v1766, %v1818
  %v1899 = vmul.f32 %v1767, %v1818
  %v1900 = vmul.f32 %v1768, %v1818
  %v1901 = vmul.f32 %v1769, %v1818
  %v1902 = vmul.f32 %v1770, %v1818
  %v1903 = vmul.f32 %v1771, %v1818
  %v1904 = vmul.f32 %v1772, %v1818
  %v1905 = vmul.f32 %v1773, %v1818
  %v1906 = vmul.f32 %v1774, %v1818
  %v1907 = vmul.f32 %v1775, %v1818
  %v1908 = vmul.f32 %v1776, %v1818
  %v1909 = vmul.f32 %v1777, %v1818
  %v1910 = vmul.f32 %v1778, %v1818
  %v1911 = vmul.f32 %v1779, %v1818
  %v1912 = vmul.f32 %v1780, %v1818
  %v1913 = vmul.f32 %v1781, %v1818
  %v1914 = vmul.f32 %v1782, %v1818
  %v1915 = vmul.f32 %v1783, %v1818
  %v1916 = vmul.f32 %v1784, %v1818
  %v1917 = vmul.f32 %v1785, %v1818
  %v1918 = vmul.f32 %v1786, %v1818
  %v1919 = vmul.f32 %v1787, %v1818
  %v1920 = vmul.f32 %v1788, %v1818
  %v1921 = vmul.f32 %v1789, %v1818
  %v1922 = vmul.f32 %v1790, %v1818
  %v1923 = vmul.f32 %v1791, %v1818
  %v1924 = vmul.f32 %v1792, %v1818
  %v1925 = vmul.f32 %v1793, %v1818
  %v1926 = vmul.f32 %v1794, %v1818
  %v1927 = vmul.f32 %v1795, %v1818
  %v1928 = vmul.f32 %v1796, %v1818
  %v1929 = vmul.f32 %v1797, %v1818
  %v1930 = vmul.f32 %v1798, %v1818
  %v1931 = vmul.f32 %v1799, %v1818
  %v1932 = vmul.f32 %v1800, %v1818
  %v1933 = vmul.f32 %v1801, %v1818
  %v1934 = vmul.f32 %v1802, %v1818
  %v1935 = vmul.f32 %v1803, %v1818
  %v1936 = vmul.f32 %v1804, %v1818
  %v1937 = vmul.f32 %v1805, %v1818
  %v1938 = vmul.f32 %v1806, %v1818
  %v1939 = vmul.f32 %v1807, %v1818
  %v1940 = vmul.f32 %v1808, %v1818
  %v1941 = vmul.f32 %v1809, %v1818
  %v1942 = vmul.f32 %v1810, %v1818
  %v1943 = vmul.f32 %v1811, %v1818
  %v1944 = vmul.f32 %v1812, %v1818
  %v1945 = vmul.f32 %v1813, %v1818
  %v1946 = vmul.f32 %v1814, %v1818
  %v1947 = vmul.f32 %v1815, %v1818
  %v1948 = vsel %vm1166, %v1820, 0.0
  %1949 = vadd.xlane.f32.xlu0 %v1948
  %v1950 = vpop.xlane.xlu0 %1949
  %v1951 = vsel %vm1166, %v1821, 0.0
  %1952 = vadd.xlane.f32.xlu0 %v1951
  %v1953 = vpop.xlane.xlu0 %1952
  %v1954 = vsel %vm1166, %v1822, 0.0
  %1955 = vadd.xlane.f32.xlu0 %v1954
  %v1956 = vpop.xlane.xlu0 %1955
  %v1957 = vsel %vm1166, %v1823, 0.0
  %1958 = vadd.xlane.f32.xlu0 %v1957
  %v1959 = vpop.xlane.xlu0 %1958
  %v1960 = vsel %vm1166, %v1824, 0.0
  %1961 = vadd.xlane.f32.xlu0 %v1960
  %v1962 = vpop.xlane.xlu0 %1961
  %v1963 = vsel %vm1166, %v1825, 0.0
  %1964 = vadd.xlane.f32.xlu0 %v1963
  %v1965 = vpop.xlane.xlu0 %1964
  %v1966 = vsel %vm1166, %v1826, 0.0
  %1967 = vadd.xlane.f32.xlu0 %v1966
  %v1968 = vpop.xlane.xlu0 %1967
  %v1969 = vsel %vm1166, %v1827, 0.0
  %1970 = vadd.xlane.f32.xlu0 %v1969
  %v1971 = vpop.xlane.xlu0 %1970
  %v1972 = vsel %vm1166, %v1828, 0.0
  %1973 = vadd.xlane.f32.xlu0 %v1972
  %v1974 = vpop.xlane.xlu0 %1973
  %v1975 = vsel %vm1166, %v1829, 0.0
  %1976 = vadd.xlane.f32.xlu0 %v1975
  %v1977 = vpop.xlane.xlu0 %1976
  %v1978 = vsel %vm1166, %v1830, 0.0
  %1979 = vadd.xlane.f32.xlu0 %v1978
  %v1980 = vpop.xlane.xlu0 %1979
  %v1981 = vsel %vm1166, %v1831, 0.0
  %1982 = vadd.xlane.f32.xlu0 %v1981
  %v1983 = vpop.xlane.xlu0 %1982
  %v1984 = vsel %vm1166, %v1832, 0.0
  %1985 = vadd.xlane.f32.xlu0 %v1984
  %v1986 = vpop.xlane.xlu0 %1985
  %v1987 = vsel %vm1166, %v1833, 0.0
  %1988 = vadd.xlane.f32.xlu0 %v1987
  %v1989 = vpop.xlane.xlu0 %1988
  %v1990 = vsel %vm1166, %v1834, 0.0
  %1991 = vadd.xlane.f32.xlu0 %v1990
  %v1992 = vpop.xlane.xlu0 %1991
  %v1993 = vsel %vm1166, %v1835, 0.0
  %1994 = vadd.xlane.f32.xlu0 %v1993
  %v1995 = vpop.xlane.xlu0 %1994
  %v1996 = vsel %vm1166, %v1836, 0.0
  %1997 = vadd.xlane.f32.xlu0 %v1996
  %v1998 = vpop.xlane.xlu0 %1997
  %v1999 = vsel %vm1166, %v1837, 0.0
  %2000 = vadd.xlane.f32.xlu0 %v1999
  %v2001 = vpop.xlane.xlu0 %2000
  %v2002 = vsel %vm1166, %v1838, 0.0
  %2003 = vadd.xlane.f32.xlu0 %v2002
  %v2004 = vpop.xlane.xlu0 %2003
  %v2005 = vsel %vm1166, %v1839, 0.0
  %2006 = vadd.xlane.f32.xlu0 %v2005
  %v2007 = vpop.xlane.xlu0 %2006
  %v2008 = vsel %vm1166, %v1840, 0.0
  %2009 = vadd.xlane.f32.xlu0 %v2008
  %v2010 = vpop.xlane.xlu0 %2009
  %v2011 = vsel %vm1166, %v1841, 0.0
  %2012 = vadd.xlane.f32.xlu0 %v2011
  %v2013 = vpop.xlane.xlu0 %2012
  %v2014 = vsel %vm1166, %v1842, 0.0
  %2015 = vadd.xlane.f32.xlu0 %v2014
  %v2016 = vpop.xlane.xlu0 %2015
  %v2017 = vsel %vm1166, %v1843, 0.0
  %2018 = vadd.xlane.f32.xlu0 %v2017
  %v2019 = vpop.xlane.xlu0 %2018
  %v2020 = vsel %vm1166, %v1844, 0.0
  %2021 = vadd.xlane.f32.xlu0 %v2020
  %v2022 = vpop.xlane.xlu0 %2021
  %v2023 = vsel %vm1166, %v1845, 0.0
  %2024 = vadd.xlane.f32.xlu0 %v2023
  %v2025 = vpop.xlane.xlu0 %2024
  %v2026 = vsel %vm1166, %v1846, 0.0
  %2027 = vadd.xlane.f32.xlu0 %v2026
  %v2028 = vpop.xlane.xlu0 %2027
  %v2029 = vsel %vm1166, %v1847, 0.0
  %2030 = vadd.xlane.f32.xlu0 %v2029
  %v2031 = vpop.xlane.xlu0 %2030
  %v2032 = vsel %vm1166, %v1848, 0.0
  %2033 = vadd.xlane.f32.xlu0 %v2032
  %v2034 = vpop.xlane.xlu0 %2033
  %v2035 = vsel %vm1166, %v1849, 0.0
  %2036 = vadd.xlane.f32.xlu0 %v2035
  %v2037 = vpop.xlane.xlu0 %2036
  %v2038 = vsel %vm1166, %v1850, 0.0
  %2039 = vadd.xlane.f32.xlu0 %v2038
  %v2040 = vpop.xlane.xlu0 %2039
  %v2041 = vsel %vm1166, %v1851, 0.0
  %2042 = vadd.xlane.f32.xlu0 %v2041
  %v2043 = vpop.xlane.xlu0 %2042
  %v2044 = vsel %vm1166, %v1852, 0.0
  %2045 = vadd.xlane.f32.xlu0 %v2044
  %v2046 = vpop.xlane.xlu0 %2045
  %v2047 = vsel %vm1166, %v1853, 0.0
  %2048 = vadd.xlane.f32.xlu0 %v2047
  %v2049 = vpop.xlane.xlu0 %2048
  %v2050 = vsel %vm1166, %v1854, 0.0
  %2051 = vadd.xlane.f32.xlu0 %v2050
  %v2052 = vpop.xlane.xlu0 %2051
  %v2053 = vsel %vm1166, %v1855, 0.0
  %2054 = vadd.xlane.f32.xlu0 %v2053
  %v2055 = vpop.xlane.xlu0 %2054
  %v2056 = vsel %vm1166, %v1856, 0.0
  %2057 = vadd.xlane.f32.xlu0 %v2056
  %v2058 = vpop.xlane.xlu0 %2057
  %v2059 = vsel %vm1166, %v1857, 0.0
  %2060 = vadd.xlane.f32.xlu0 %v2059
  %v2061 = vpop.xlane.xlu0 %2060
  %v2062 = vsel %vm1166, %v1858, 0.0
  %2063 = vadd.xlane.f32.xlu0 %v2062
  %v2064 = vpop.xlane.xlu0 %2063
  %v2065 = vsel %vm1166, %v1859, 0.0
  %2066 = vadd.xlane.f32.xlu0 %v2065
  %v2067 = vpop.xlane.xlu0 %2066
  %v2068 = vsel %vm1166, %v1860, 0.0
  %2069 = vadd.xlane.f32.xlu0 %v2068
  %v2070 = vpop.xlane.xlu0 %2069
  %v2071 = vsel %vm1166, %v1861, 0.0
  %2072 = vadd.xlane.f32.xlu0 %v2071
  %v2073 = vpop.xlane.xlu0 %2072
  %v2074 = vsel %vm1166, %v1862, 0.0
  %2075 = vadd.xlane.f32.xlu0 %v2074
  %v2076 = vpop.xlane.xlu0 %2075
  %v2077 = vsel %vm1166, %v1863, 0.0
  %2078 = vadd.xlane.f32.xlu0 %v2077
  %v2079 = vpop.xlane.xlu0 %2078
  %v2080 = vsel %vm1166, %v1864, 0.0
  %2081 = vadd.xlane.f32.xlu0 %v2080
  %v2082 = vpop.xlane.xlu0 %2081
  %v2083 = vsel %vm1166, %v1865, 0.0
  %2084 = vadd.xlane.f32.xlu0 %v2083
  %v2085 = vpop.xlane.xlu0 %2084
  %v2086 = vsel %vm1166, %v1866, 0.0
  %2087 = vadd.xlane.f32.xlu0 %v2086
  %v2088 = vpop.xlane.xlu0 %2087
  %v2089 = vsel %vm1166, %v1867, 0.0
  %2090 = vadd.xlane.f32.xlu0 %v2089
  %v2091 = vpop.xlane.xlu0 %2090
  %v2092 = vsel %vm1166, %v1868, 0.0
  %2093 = vadd.xlane.f32.xlu0 %v2092
  %v2094 = vpop.xlane.xlu0 %2093
  %v2095 = vsel %vm1166, %v1869, 0.0
  %2096 = vadd.xlane.f32.xlu0 %v2095
  %v2097 = vpop.xlane.xlu0 %2096
  %v2098 = vsel %vm1166, %v1870, 0.0
  %2099 = vadd.xlane.f32.xlu0 %v2098
  %v2100 = vpop.xlane.xlu0 %2099
  %v2101 = vsel %vm1166, %v1871, 0.0
  %2102 = vadd.xlane.f32.xlu0 %v2101
  %v2103 = vpop.xlane.xlu0 %2102
  %v2104 = vsel %vm1166, %v1872, 0.0
  %2105 = vadd.xlane.f32.xlu0 %v2104
  %v2106 = vpop.xlane.xlu0 %2105
  %v2107 = vsel %vm1166, %v1873, 0.0
  %2108 = vadd.xlane.f32.xlu0 %v2107
  %v2109 = vpop.xlane.xlu0 %2108
  %v2110 = vsel %vm1166, %v1874, 0.0
  %2111 = vadd.xlane.f32.xlu0 %v2110
  %v2112 = vpop.xlane.xlu0 %2111
  %v2113 = vsel %vm1166, %v1875, 0.0
  %2114 = vadd.xlane.f32.xlu0 %v2113
  %v2115 = vpop.xlane.xlu0 %2114
  %v2116 = vsel %vm1166, %v1876, 0.0
  %2117 = vadd.xlane.f32.xlu0 %v2116
  %v2118 = vpop.xlane.xlu0 %2117
  %v2119 = vsel %vm1166, %v1877, 0.0
  %2120 = vadd.xlane.f32.xlu0 %v2119
  %v2121 = vpop.xlane.xlu0 %2120
  %v2122 = vsel %vm1166, %v1878, 0.0
  %2123 = vadd.xlane.f32.xlu0 %v2122
  %v2124 = vpop.xlane.xlu0 %2123
  %v2125 = vsel %vm1166, %v1879, 0.0
  %2126 = vadd.xlane.f32.xlu0 %v2125
  %v2127 = vpop.xlane.xlu0 %2126
  %v2128 = vsel %vm1166, %v1880, 0.0
  %2129 = vadd.xlane.f32.xlu0 %v2128
  %v2130 = vpop.xlane.xlu0 %2129
  %v2131 = vsel %vm1166, %v1881, 0.0
  %2132 = vadd.xlane.f32.xlu0 %v2131
  %v2133 = vpop.xlane.xlu0 %2132
  %v2134 = vsel %vm1166, %v1882, 0.0
  %2135 = vadd.xlane.f32.xlu0 %v2134
  %v2136 = vpop.xlane.xlu0 %2135
  %v2137 = vsel %vm1166, %v1883, 0.0
  %2138 = vadd.xlane.f32.xlu0 %v2137
  %v2139 = vpop.xlane.xlu0 %2138
  %v2140 = vsel %vm1166, %v1884, 0.0
  %2141 = vadd.xlane.f32.xlu0 %v2140
  %v2142 = vpop.xlane.xlu0 %2141
  %v2143 = vsel %vm1166, %v1885, 0.0
  %2144 = vadd.xlane.f32.xlu0 %v2143
  %v2145 = vpop.xlane.xlu0 %2144
  %v2146 = vsel %vm1166, %v1886, 0.0
  %2147 = vadd.xlane.f32.xlu0 %v2146
  %v2148 = vpop.xlane.xlu0 %2147
  %v2149 = vsel %vm1166, %v1887, 0.0
  %2150 = vadd.xlane.f32.xlu0 %v2149
  %v2151 = vpop.xlane.xlu0 %2150
  %v2152 = vsel %vm1166, %v1888, 0.0
  %2153 = vadd.xlane.f32.xlu0 %v2152
  %v2154 = vpop.xlane.xlu0 %2153
  %v2155 = vsel %vm1166, %v1889, 0.0
  %2156 = vadd.xlane.f32.xlu0 %v2155
  %v2157 = vpop.xlane.xlu0 %2156
  %v2158 = vsel %vm1166, %v1890, 0.0
  %2159 = vadd.xlane.f32.xlu0 %v2158
  %v2160 = vpop.xlane.xlu0 %2159
  %v2161 = vsel %vm1166, %v1891, 0.0
  %2162 = vadd.xlane.f32.xlu0 %v2161
  %v2163 = vpop.xlane.xlu0 %2162
  %v2164 = vsel %vm1166, %v1892, 0.0
  %2165 = vadd.xlane.f32.xlu0 %v2164
  %v2166 = vpop.xlane.xlu0 %2165
  %v2167 = vsel %vm1166, %v1893, 0.0
  %2168 = vadd.xlane.f32.xlu0 %v2167
  %v2169 = vpop.xlane.xlu0 %2168
  %v2170 = vsel %vm1166, %v1894, 0.0
  %2171 = vadd.xlane.f32.xlu0 %v2170
  %v2172 = vpop.xlane.xlu0 %2171
  %v2173 = vsel %vm1166, %v1895, 0.0
  %2174 = vadd.xlane.f32.xlu0 %v2173
  %v2175 = vpop.xlane.xlu0 %2174
  %v2176 = vsel %vm1166, %v1896, 0.0
  %2177 = vadd.xlane.f32.xlu0 %v2176
  %v2178 = vpop.xlane.xlu0 %2177
  %v2179 = vsel %vm1166, %v1897, 0.0
  %2180 = vadd.xlane.f32.xlu0 %v2179
  %v2181 = vpop.xlane.xlu0 %2180
  %v2182 = vsel %vm1166, %v1898, 0.0
  %2183 = vadd.xlane.f32.xlu0 %v2182
  %v2184 = vpop.xlane.xlu0 %2183
  %v2185 = vsel %vm1166, %v1899, 0.0
  %2186 = vadd.xlane.f32.xlu0 %v2185
  %v2187 = vpop.xlane.xlu0 %2186
  %v2188 = vsel %vm1166, %v1900, 0.0
  %2189 = vadd.xlane.f32.xlu0 %v2188
  %v2190 = vpop.xlane.xlu0 %2189
  %v2191 = vsel %vm1166, %v1901, 0.0
  %2192 = vadd.xlane.f32.xlu0 %v2191
  %v2193 = vpop.xlane.xlu0 %2192
  %v2194 = vsel %vm1166, %v1902, 0.0
  %2195 = vadd.xlane.f32.xlu0 %v2194
  %v2196 = vpop.xlane.xlu0 %2195
  %v2197 = vsel %vm1166, %v1903, 0.0
  %2198 = vadd.xlane.f32.xlu0 %v2197
  %v2199 = vpop.xlane.xlu0 %2198
  %v2200 = vsel %vm1166, %v1904, 0.0
  %2201 = vadd.xlane.f32.xlu0 %v2200
  %v2202 = vpop.xlane.xlu0 %2201
  %v2203 = vsel %vm1166, %v1905, 0.0
  %2204 = vadd.xlane.f32.xlu0 %v2203
  %v2205 = vpop.xlane.xlu0 %2204
  %v2206 = vsel %vm1166, %v1906, 0.0
  %2207 = vadd.xlane.f32.xlu0 %v2206
  %v2208 = vpop.xlane.xlu0 %2207
  %v2209 = vsel %vm1166, %v1907, 0.0
  %2210 = vadd.xlane.f32.xlu0 %v2209
  %v2211 = vpop.xlane.xlu0 %2210
  %v2212 = vsel %vm1166, %v1908, 0.0
  %2213 = vadd.xlane.f32.xlu0 %v2212
  %v2214 = vpop.xlane.xlu0 %2213
  %v2215 = vsel %vm1166, %v1909, 0.0
  %2216 = vadd.xlane.f32.xlu0 %v2215
  %v2217 = vpop.xlane.xlu0 %2216
  %v2218 = vsel %vm1166, %v1910, 0.0
  %2219 = vadd.xlane.f32.xlu0 %v2218
  %v2220 = vpop.xlane.xlu0 %2219
  %v2221 = vsel %vm1166, %v1911, 0.0
  %2222 = vadd.xlane.f32.xlu0 %v2221
  %v2223 = vpop.xlane.xlu0 %2222
  %v2224 = vsel %vm1166, %v1912, 0.0
  %2225 = vadd.xlane.f32.xlu0 %v2224
  %v2226 = vpop.xlane.xlu0 %2225
  %v2227 = vsel %vm1166, %v1913, 0.0
  %2228 = vadd.xlane.f32.xlu0 %v2227
  %v2229 = vpop.xlane.xlu0 %2228
  %v2230 = vsel %vm1166, %v1914, 0.0
  %2231 = vadd.xlane.f32.xlu0 %v2230
  %v2232 = vpop.xlane.xlu0 %2231
  %v2233 = vsel %vm1166, %v1915, 0.0
  %2234 = vadd.xlane.f32.xlu0 %v2233
  %v2235 = vpop.xlane.xlu0 %2234
  %v2236 = vsel %vm1166, %v1916, 0.0
  %2237 = vadd.xlane.f32.xlu0 %v2236
  %v2238 = vpop.xlane.xlu0 %2237
  %v2239 = vsel %vm1166, %v1917, 0.0
  %2240 = vadd.xlane.f32.xlu0 %v2239
  %v2241 = vpop.xlane.xlu0 %2240
  %v2242 = vsel %vm1166, %v1918, 0.0
  %2243 = vadd.xlane.f32.xlu0 %v2242
  %v2244 = vpop.xlane.xlu0 %2243
  %v2245 = vsel %vm1166, %v1919, 0.0
  %2246 = vadd.xlane.f32.xlu0 %v2245
  %v2247 = vpop.xlane.xlu0 %2246
  %v2248 = vsel %vm1166, %v1920, 0.0
  %2249 = vadd.xlane.f32.xlu0 %v2248
  %v2250 = vpop.xlane.xlu0 %2249
  %v2251 = vsel %vm1166, %v1921, 0.0
  %2252 = vadd.xlane.f32.xlu0 %v2251
  %v2253 = vpop.xlane.xlu0 %2252
  %v2254 = vsel %vm1166, %v1922, 0.0
  %2255 = vadd.xlane.f32.xlu0 %v2254
  %v2256 = vpop.xlane.xlu0 %2255
  %v2257 = vsel %vm1166, %v1923, 0.0
  %2258 = vadd.xlane.f32.xlu0 %v2257
  %v2259 = vpop.xlane.xlu0 %2258
  %v2260 = vsel %vm1166, %v1924, 0.0
  %2261 = vadd.xlane.f32.xlu0 %v2260
  %v2262 = vpop.xlane.xlu0 %2261
  %v2263 = vsel %vm1166, %v1925, 0.0
  %2264 = vadd.xlane.f32.xlu0 %v2263
  %v2265 = vpop.xlane.xlu0 %2264
  %v2266 = vsel %vm1166, %v1926, 0.0
  %2267 = vadd.xlane.f32.xlu0 %v2266
  %v2268 = vpop.xlane.xlu0 %2267
  %v2269 = vsel %vm1166, %v1927, 0.0
  %2270 = vadd.xlane.f32.xlu0 %v2269
  %v2271 = vpop.xlane.xlu0 %2270
  %v2272 = vsel %vm1166, %v1928, 0.0
  %2273 = vadd.xlane.f32.xlu0 %v2272
  %v2274 = vpop.xlane.xlu0 %2273
  %v2275 = vsel %vm1166, %v1929, 0.0
  %2276 = vadd.xlane.f32.xlu0 %v2275
  %v2277 = vpop.xlane.xlu0 %2276
  %v2278 = vsel %vm1166, %v1930, 0.0
  %2279 = vadd.xlane.f32.xlu0 %v2278
  %v2280 = vpop.xlane.xlu0 %2279
  %v2281 = vsel %vm1166, %v1931, 0.0
  %2282 = vadd.xlane.f32.xlu0 %v2281
  %v2283 = vpop.xlane.xlu0 %2282
  %v2284 = vsel %vm1166, %v1932, 0.0
  %2285 = vadd.xlane.f32.xlu0 %v2284
  %v2286 = vpop.xlane.xlu0 %2285
  %v2287 = vsel %vm1166, %v1933, 0.0
  %2288 = vadd.xlane.f32.xlu0 %v2287
  %v2289 = vpop.xlane.xlu0 %2288
  %v2290 = vsel %vm1166, %v1934, 0.0
  %2291 = vadd.xlane.f32.xlu0 %v2290
  %v2292 = vpop.xlane.xlu0 %2291
  %v2293 = vsel %vm1166, %v1935, 0.0
  %2294 = vadd.xlane.f32.xlu0 %v2293
  %v2295 = vpop.xlane.xlu0 %2294
  %v2296 = vsel %vm1166, %v1936, 0.0
  %2297 = vadd.xlane.f32.xlu0 %v2296
  %v2298 = vpop.xlane.xlu0 %2297
  %v2299 = vsel %vm1166, %v1937, 0.0
  %2300 = vadd.xlane.f32.xlu0 %v2299
  %v2301 = vpop.xlane.xlu0 %2300
  %v2302 = vsel %vm1166, %v1938, 0.0
  %2303 = vadd.xlane.f32.xlu0 %v2302
  %v2304 = vpop.xlane.xlu0 %2303
  %v2305 = vsel %vm1166, %v1939, 0.0
  %2306 = vadd.xlane.f32.xlu0 %v2305
  %v2307 = vpop.xlane.xlu0 %2306
  %v2308 = vsel %vm1166, %v1940, 0.0
  %2309 = vadd.xlane.f32.xlu0 %v2308
  %v2310 = vpop.xlane.xlu0 %2309
  %v2311 = vsel %vm1166, %v1941, 0.0
  %2312 = vadd.xlane.f32.xlu0 %v2311
  %v2313 = vpop.xlane.xlu0 %2312
  %v2314 = vsel %vm1166, %v1942, 0.0
  %2315 = vadd.xlane.f32.xlu0 %v2314
  %v2316 = vpop.xlane.xlu0 %2315
  %v2317 = vsel %vm1166, %v1943, 0.0
  %2318 = vadd.xlane.f32.xlu0 %v2317
  %v2319 = vpop.xlane.xlu0 %2318
  %v2320 = vsel %vm1166, %v1944, 0.0
  %2321 = vadd.xlane.f32.xlu0 %v2320
  %v2322 = vpop.xlane.xlu0 %2321
  %v2323 = vsel %vm1166, %v1945, 0.0
  %2324 = vadd.xlane.f32.xlu0 %v2323
  %v2325 = vpop.xlane.xlu0 %2324
  %v2326 = vsel %vm1166, %v1946, 0.0
  %2327 = vadd.xlane.f32.xlu0 %v2326
  %v2328 = vpop.xlane.xlu0 %2327
  %v2329 = vsel %vm1166, %v1947, 0.0
  %2330 = vadd.xlane.f32.xlu0 %v2329
  %v2331 = vpop.xlane.xlu0 %2330
  %v2332 = vld [vmem:[#allocation2] sm:$0x1]
  %v2334 = vperm.slane %v2332, 0
  %2335 = vset.pattern.permute.xlu0 0
  %2336 = vperm.xlu0 %2335, %v2334
  %v2337 = vpop.permute.xlu0 %2336
  %v2339 = vadd.f32 %v1950, %v2337
  %v2340 = vadd.f32 %v1953, %v2337
  %v2341 = vadd.f32 %v1956, %v2337
  %v2342 = vadd.f32 %v1959, %v2337
  %v2343 = vadd.f32 %v1962, %v2337
  %v2344 = vadd.f32 %v1965, %v2337
  %v2345 = vadd.f32 %v1968, %v2337
  %v2346 = vadd.f32 %v1971, %v2337
  %v2347 = vadd.f32 %v1974, %v2337
  %v2348 = vadd.f32 %v1977, %v2337
  %v2349 = vadd.f32 %v1980, %v2337
  %v2350 = vadd.f32 %v1983, %v2337
  %v2351 = vadd.f32 %v1986, %v2337
  %v2352 = vadd.f32 %v1989, %v2337
  %v2353 = vadd.f32 %v1992, %v2337
  %v2354 = vadd.f32 %v1995, %v2337
  %v2355 = vadd.f32 %v1998, %v2337
  %v2356 = vadd.f32 %v2001, %v2337
  %v2357 = vadd.f32 %v2004, %v2337
  %v2358 = vadd.f32 %v2007, %v2337
  %v2359 = vadd.f32 %v2010, %v2337
  %v2360 = vadd.f32 %v2013, %v2337
  %v2361 = vadd.f32 %v2016, %v2337
  %v2362 = vadd.f32 %v2019, %v2337
  %v2363 = vadd.f32 %v2022, %v2337
  %v2364 = vadd.f32 %v2025, %v2337
  %v2365 = vadd.f32 %v2028, %v2337
  %v2366 = vadd.f32 %v2031, %v2337
  %v2367 = vadd.f32 %v2034, %v2337
  %v2368 = vadd.f32 %v2037, %v2337
  %v2369 = vadd.f32 %v2040, %v2337
  %v2370 = vadd.f32 %v2043, %v2337
  %v2371 = vadd.f32 %v2046, %v2337
  %v2372 = vadd.f32 %v2049, %v2337
  %v2373 = vadd.f32 %v2052, %v2337
  %v2374 = vadd.f32 %v2055, %v2337
  %v2375 = vadd.f32 %v2058, %v2337
  %v2376 = vadd.f32 %v2061, %v2337
  %v2377 = vadd.f32 %v2064, %v2337
  %v2378 = vadd.f32 %v2067, %v2337
  %v2379 = vadd.f32 %v2070, %v2337
  %v2380 = vadd.f32 %v2073, %v2337
  %v2381 = vadd.f32 %v2076, %v2337
  %v2382 = vadd.f32 %v2079, %v2337
  %v2383 = vadd.f32 %v2082, %v2337
  %v2384 = vadd.f32 %v2085, %v2337
  %v2385 = vadd.f32 %v2088, %v2337
  %v2386 = vadd.f32 %v2091, %v2337
  %v2387 = vadd.f32 %v2094, %v2337
  %v2388 = vadd.f32 %v2097, %v2337
  %v2389 = vadd.f32 %v2100, %v2337
  %v2390 = vadd.f32 %v2103, %v2337
  %v2391 = vadd.f32 %v2106, %v2337
  %v2392 = vadd.f32 %v2109, %v2337
  %v2393 = vadd.f32 %v2112, %v2337
  %v2394 = vadd.f32 %v2115, %v2337
  %v2395 = vadd.f32 %v2118, %v2337
  %v2396 = vadd.f32 %v2121, %v2337
  %v2397 = vadd.f32 %v2124, %v2337
  %v2398 = vadd.f32 %v2127, %v2337
  %v2399 = vadd.f32 %v2130, %v2337
  %v2400 = vadd.f32 %v2133, %v2337
  %v2401 = vadd.f32 %v2136, %v2337
  %v2402 = vadd.f32 %v2139, %v2337
  %v2403 = vadd.f32 %v2142, %v2337
  %v2404 = vadd.f32 %v2145, %v2337
  %v2405 = vadd.f32 %v2148, %v2337
  %v2406 = vadd.f32 %v2151, %v2337
  %v2407 = vadd.f32 %v2154, %v2337
  %v2408 = vadd.f32 %v2157, %v2337
  %v2409 = vadd.f32 %v2160, %v2337
  %v2410 = vadd.f32 %v2163, %v2337
  %v2411 = vadd.f32 %v2166, %v2337
  %v2412 = vadd.f32 %v2169, %v2337
  %v2413 = vadd.f32 %v2172, %v2337
  %v2414 = vadd.f32 %v2175, %v2337
  %v2415 = vadd.f32 %v2178, %v2337
  %v2416 = vadd.f32 %v2181, %v2337
  %v2417 = vadd.f32 %v2184, %v2337
  %v2418 = vadd.f32 %v2187, %v2337
  %v2419 = vadd.f32 %v2190, %v2337
  %v2420 = vadd.f32 %v2193, %v2337
  %v2421 = vadd.f32 %v2196, %v2337
  %v2422 = vadd.f32 %v2199, %v2337
  %v2423 = vadd.f32 %v2202, %v2337
  %v2424 = vadd.f32 %v2205, %v2337
  %v2425 = vadd.f32 %v2208, %v2337
  %v2426 = vadd.f32 %v2211, %v2337
  %v2427 = vadd.f32 %v2214, %v2337
  %v2428 = vadd.f32 %v2217, %v2337
  %v2429 = vadd.f32 %v2220, %v2337
  %v2430 = vadd.f32 %v2223, %v2337
  %v2431 = vadd.f32 %v2226, %v2337
  %v2432 = vadd.f32 %v2229, %v2337
  %v2433 = vadd.f32 %v2232, %v2337
  %v2434 = vadd.f32 %v2235, %v2337
  %v2435 = vadd.f32 %v2238, %v2337
  %v2436 = vadd.f32 %v2241, %v2337
  %v2437 = vadd.f32 %v2244, %v2337
  %v2438 = vadd.f32 %v2247, %v2337
  %v2439 = vadd.f32 %v2250, %v2337
  %v2440 = vadd.f32 %v2253, %v2337
  %v2441 = vadd.f32 %v2256, %v2337
  %v2442 = vadd.f32 %v2259, %v2337
  %v2443 = vadd.f32 %v2262, %v2337
  %v2444 = vadd.f32 %v2265, %v2337
  %v2445 = vadd.f32 %v2268, %v2337
  %v2446 = vadd.f32 %v2271, %v2337
  %v2447 = vadd.f32 %v2274, %v2337
  %v2448 = vadd.f32 %v2277, %v2337
  %v2449 = vadd.f32 %v2280, %v2337
  %v2450 = vadd.f32 %v2283, %v2337
  %v2451 = vadd.f32 %v2286, %v2337
  %v2452 = vadd.f32 %v2289, %v2337
  %v2453 = vadd.f32 %v2292, %v2337
  %v2454 = vadd.f32 %v2295, %v2337
  %v2455 = vadd.f32 %v2298, %v2337
  %v2456 = vadd.f32 %v2301, %v2337
  %v2457 = vadd.f32 %v2304, %v2337
  %v2458 = vadd.f32 %v2307, %v2337
  %v2459 = vadd.f32 %v2310, %v2337
  %v2460 = vadd.f32 %v2313, %v2337
  %v2461 = vadd.f32 %v2316, %v2337
  %v2462 = vadd.f32 %v2319, %v2337
  %v2463 = vadd.f32 %v2322, %v2337
  %v2464 = vadd.f32 %v2325, %v2337
  %v2465 = vadd.f32 %v2328, %v2337
  %v2466 = vadd.f32 %v2331, %v2337
  %v2595 = vlaneseq
  %v2596 = vand.u32 %v2595, 127
  %v2597 = vperm.slane %v2339, %v2596
  %v2598 = vadd.s32 %v2596, 4294967288
  %v2599 = vperm.slane %v2340, %v2598
  %vm2600 = vcmask 130112
  %v2601 = vsel %vm2600, %v2599, %v2597
  %v2602 = vadd.s32 %v2596, 4294967280
  %v2603 = vperm.slane %v2341, %v2602
  %vm2604 = vcmask 195712
  %v2605 = vsel %vm2604, %v2603, %v2601
  %v2606 = vadd.s32 %v2596, 4294967272
  %v2607 = vperm.slane %v2342, %v2606
  %vm2608 = vcmask 261312
  %v2609 = vsel %vm2608, %v2607, %v2605
  %v2610 = vadd.s32 %v2596, 4294967264
  %v2611 = vperm.slane %v2343, %v2610
  %vm2612 = vcmask 326912
  %v2613 = vsel %vm2612, %v2611, %v2609
  %v2614 = vadd.s32 %v2596, 4294967256
  %v2615 = vperm.slane %v2344, %v2614
  %vm2616 = vcmask 392512
  %v2617 = vsel %vm2616, %v2615, %v2613
  %v2618 = vadd.s32 %v2596, 4294967248
  %v2619 = vperm.slane %v2345, %v2618
  %vm2620 = vcmask 458112
  %v2621 = vsel %vm2620, %v2619, %v2617
  %v2622 = vadd.s32 %v2596, 4294967240
  %v2623 = vperm.slane %v2346, %v2622
  %vm2624 = vcmask 523712
  %v2625 = vsel %vm2624, %v2623, %v2621
  %v2626 = vadd.s32 %v2596, 4294967232
  %v2627 = vperm.slane %v2347, %v2626
  %vm2628 = vcmask 589312
  %v2629 = vsel %vm2628, %v2627, %v2625
  %v2630 = vadd.s32 %v2596, 4294967224
  %v2631 = vperm.slane %v2348, %v2630
  %vm2632 = vcmask 654912
  %v2633 = vsel %vm2632, %v2631, %v2629
  %v2634 = vadd.s32 %v2596, 4294967216
  %v2635 = vperm.slane %v2349, %v2634
  %vm2636 = vcmask 720512
  %v2637 = vsel %vm2636, %v2635, %v2633
  %v2638 = vadd.s32 %v2596, 4294967208
  %v2639 = vperm.slane %v2350, %v2638
  %vm2640 = vcmask 786112
  %v2641 = vsel %vm2640, %v2639, %v2637
  %v2642 = vadd.s32 %v2596, 4294967200
  %v2643 = vperm.slane %v2351, %v2642
  %vm2644 = vcmask 851712
  %v2645 = vsel %vm2644, %v2643, %v2641
  %v2646 = vadd.s32 %v2596, 4294967192
  %v2647 = vperm.slane %v2352, %v2646
  %vm2648 = vcmask 917312
  %v2649 = vsel %vm2648, %v2647, %v2645
  %v2650 = vadd.s32 %v2596, 4294967184
  %v2651 = vperm.slane %v2353, %v2650
  %vm2652 = vcmask 982912
  %v2653 = vsel %vm2652, %v2651, %v2649
  %v2654 = vadd.s32 %v2596, 4294967176
  %v2655 = vperm.slane %v2354, %v2654
  %vm2656 = vcmask 1048512
  %v2657 = vsel %vm2656, %v2655, %v2653
  %v2658 = vperm.slane %v2355, %v2596
  %v2659 = vperm.slane %v2356, %v2598
  %v2660 = vsel %vm2600, %v2659, %v2658
  %v2661 = vperm.slane %v2357, %v2602
  %v2662 = vsel %vm2604, %v2661, %v2660
  %v2663 = vperm.slane %v2358, %v2606
  %v2664 = vsel %vm2608, %v2663, %v2662
  %v2665 = vperm.slane %v2359, %v2610
  %v2666 = vsel %vm2612, %v2665, %v2664
  %v2667 = vperm.slane %v2360, %v2614
  %v2668 = vsel %vm2616, %v2667, %v2666
  %v2669 = vperm.slane %v2361, %v2618
  %v2670 = vsel %vm2620, %v2669, %v2668
  %v2671 = vperm.slane %v2362, %v2622
  %v2672 = vsel %vm2624, %v2671, %v2670
  %v2673 = vperm.slane %v2363, %v2626
  %v2674 = vsel %vm2628, %v2673, %v2672
  %v2675 = vperm.slane %v2364, %v2630
  %v2676 = vsel %vm2632, %v2675, %v2674
  %v2677 = vperm.slane %v2365, %v2634
  %v2678 = vsel %vm2636, %v2677, %v2676
  %v2679 = vperm.slane %v2366, %v2638
  %v2680 = vsel %vm2640, %v2679, %v2678
  %v2681 = vperm.slane %v2367, %v2642
  %v2682 = vsel %vm2644, %v2681, %v2680
  %v2683 = vperm.slane %v2368, %v2646
  %v2684 = vsel %vm2648, %v2683, %v2682
  %v2685 = vperm.slane %v2369, %v2650
  %v2686 = vsel %vm2652, %v2685, %v2684
  %v2687 = vperm.slane %v2370, %v2654
  %v2688 = vsel %vm2656, %v2687, %v2686
  %v2689 = vperm.slane %v2371, %v2596
  %v2690 = vperm.slane %v2372, %v2598
  %v2691 = vsel %vm2600, %v2690, %v2689
  %v2692 = vperm.slane %v2373, %v2602
  %v2693 = vsel %vm2604, %v2692, %v2691
  %v2694 = vperm.slane %v2374, %v2606
  %v2695 = vsel %vm2608, %v2694, %v2693
  %v2696 = vperm.slane %v2375, %v2610
  %v2697 = vsel %vm2612, %v2696, %v2695
  %v2698 = vperm.slane %v2376, %v2614
  %v2699 = vsel %vm2616, %v2698, %v2697
  %v2700 = vperm.slane %v2377, %v2618
  %v2701 = vsel %vm2620, %v2700, %v2699
  %v2702 = vperm.slane %v2378, %v2622
  %v2703 = vsel %vm2624, %v2702, %v2701
  %v2704 = vperm.slane %v2379, %v2626
  %v2705 = vsel %vm2628, %v2704, %v2703
  %v2706 = vperm.slane %v2380, %v2630
  %v2707 = vsel %vm2632, %v2706, %v2705
  %v2708 = vperm.slane %v2381, %v2634
  %v2709 = vsel %vm2636, %v2708, %v2707
  %v2710 = vperm.slane %v2382, %v2638
  %v2711 = vsel %vm2640, %v2710, %v2709
  %v2712 = vperm.slane %v2383, %v2642
  %v2713 = vsel %vm2644, %v2712, %v2711
  %v2714 = vperm.slane %v2384, %v2646
  %v2715 = vsel %vm2648, %v2714, %v2713
  %v2716 = vperm.slane %v2385, %v2650
  %v2717 = vsel %vm2652, %v2716, %v2715
  %v2718 = vperm.slane %v2386, %v2654
  %v2719 = vsel %vm2656, %v2718, %v2717
  %v2720 = vperm.slane %v2387, %v2596
  %v2721 = vperm.slane %v2388, %v2598
  %v2722 = vsel %vm2600, %v2721, %v2720
  %v2723 = vperm.slane %v2389, %v2602
  %v2724 = vsel %vm2604, %v2723, %v2722
  %v2725 = vperm.slane %v2390, %v2606
  %v2726 = vsel %vm2608, %v2725, %v2724
  %v2727 = vperm.slane %v2391, %v2610
  %v2728 = vsel %vm2612, %v2727, %v2726
  %v2729 = vperm.slane %v2392, %v2614
  %v2730 = vsel %vm2616, %v2729, %v2728
  %v2731 = vperm.slane %v2393, %v2618
  %v2732 = vsel %vm2620, %v2731, %v2730
  %v2733 = vperm.slane %v2394, %v2622
  %v2734 = vsel %vm2624, %v2733, %v2732
  %v2735 = vperm.slane %v2395, %v2626
  %v2736 = vsel %vm2628, %v2735, %v2734
  %v2737 = vperm.slane %v2396, %v2630
  %v2738 = vsel %vm2632, %v2737, %v2736
  %v2739 = vperm.slane %v2397, %v2634
  %v2740 = vsel %vm2636, %v2739, %v2738
  %v2741 = vperm.slane %v2398, %v2638
  %v2742 = vsel %vm2640, %v2741, %v2740
  %v2743 = vperm.slane %v2399, %v2642
  %v2744 = vsel %vm2644, %v2743, %v2742
  %v2745 = vperm.slane %v2400, %v2646
  %v2746 = vsel %vm2648, %v2745, %v2744
  %v2747 = vperm.slane %v2401, %v2650
  %v2748 = vsel %vm2652, %v2747, %v2746
  %v2749 = vperm.slane %v2402, %v2654
  %v2750 = vsel %vm2656, %v2749, %v2748
  %v2751 = vperm.slane %v2403, %v2596
  %v2752 = vperm.slane %v2404, %v2598
  %v2753 = vsel %vm2600, %v2752, %v2751
  %v2754 = vperm.slane %v2405, %v2602
  %v2755 = vsel %vm2604, %v2754, %v2753
  %v2756 = vperm.slane %v2406, %v2606
  %v2757 = vsel %vm2608, %v2756, %v2755
  %v2758 = vperm.slane %v2407, %v2610
  %v2759 = vsel %vm2612, %v2758, %v2757
  %v2760 = vperm.slane %v2408, %v2614
  %v2761 = vsel %vm2616, %v2760, %v2759
  %v2762 = vperm.slane %v2409, %v2618
  %v2763 = vsel %vm2620, %v2762, %v2761
  %v2764 = vperm.slane %v2410, %v2622
  %v2765 = vsel %vm2624, %v2764, %v2763
  %v2766 = vperm.slane %v2411, %v2626
  %v2767 = vsel %vm2628, %v2766, %v2765
  %v2768 = vperm.slane %v2412, %v2630
  %v2769 = vsel %vm2632, %v2768, %v2767
  %v2770 = vperm.slane %v2413, %v2634
  %v2771 = vsel %vm2636, %v2770, %v2769
  %v2772 = vperm.slane %v2414, %v2638
  %v2773 = vsel %vm2640, %v2772, %v2771
  %v2774 = vperm.slane %v2415, %v2642
  %v2775 = vsel %vm2644, %v2774, %v2773
  %v2776 = vperm.slane %v2416, %v2646
  %v2777 = vsel %vm2648, %v2776, %v2775
  %v2778 = vperm.slane %v2417, %v2650
  %v2779 = vsel %vm2652, %v2778, %v2777
  %v2780 = vperm.slane %v2418, %v2654
  %v2781 = vsel %vm2656, %v2780, %v2779
  %v2782 = vperm.slane %v2419, %v2596
  %v2783 = vperm.slane %v2420, %v2598
  %v2784 = vsel %vm2600, %v2783, %v2782
  %v2785 = vperm.slane %v2421, %v2602
  %v2786 = vsel %vm2604, %v2785, %v2784
  %v2787 = vperm.slane %v2422, %v2606
  %v2788 = vsel %vm2608, %v2787, %v2786
  %v2789 = vperm.slane %v2423, %v2610
  %v2790 = vsel %vm2612, %v2789, %v2788
  %v2791 = vperm.slane %v2424, %v2614
  %v2792 = vsel %vm2616, %v2791, %v2790
  %v2793 = vperm.slane %v2425, %v2618
  %v2794 = vsel %vm2620, %v2793, %v2792
  %v2795 = vperm.slane %v2426, %v2622
  %v2796 = vsel %vm2624, %v2795, %v2794
  %v2797 = vperm.slane %v2427, %v2626
  %v2798 = vsel %vm2628, %v2797, %v2796
  %v2799 = vperm.slane %v2428, %v2630
  %v2800 = vsel %vm2632, %v2799, %v2798
  %v2801 = vperm.slane %v2429, %v2634
  %v2802 = vsel %vm2636, %v2801, %v2800
  %v2803 = vperm.slane %v2430, %v2638
  %v2804 = vsel %vm2640, %v2803, %v2802
  %v2805 = vperm.slane %v2431, %v2642
  %v2806 = vsel %vm2644, %v2805, %v2804
  %v2807 = vperm.slane %v2432, %v2646
  %v2808 = vsel %vm2648, %v2807, %v2806
  %v2809 = vperm.slane %v2433, %v2650
  %v2810 = vsel %vm2652, %v2809, %v2808
  %v2811 = vperm.slane %v2434, %v2654
  %v2812 = vsel %vm2656, %v2811, %v2810
  %v2813 = vperm.slane %v2435, %v2596
  %v2814 = vperm.slane %v2436, %v2598
  %v2815 = vsel %vm2600, %v2814, %v2813
  %v2816 = vperm.slane %v2437, %v2602
  %v2817 = vsel %vm2604, %v2816, %v2815
  %v2818 = vperm.slane %v2438, %v2606
  %v2819 = vsel %vm2608, %v2818, %v2817
  %v2820 = vperm.slane %v2439, %v2610
  %v2821 = vsel %vm2612, %v2820, %v2819
  %v2822 = vperm.slane %v2440, %v2614
  %v2823 = vsel %vm2616, %v2822, %v2821
  %v2824 = vperm.slane %v2441, %v2618
  %v2825 = vsel %vm2620, %v2824, %v2823
  %v2826 = vperm.slane %v2442, %v2622
  %v2827 = vsel %vm2624, %v2826, %v2825
  %v2828 = vperm.slane %v2443, %v2626
  %v2829 = vsel %vm2628, %v2828, %v2827
  %v2830 = vperm.slane %v2444, %v2630
  %v2831 = vsel %vm2632, %v2830, %v2829
  %v2832 = vperm.slane %v2445, %v2634
  %v2833 = vsel %vm2636, %v2832, %v2831
  %v2834 = vperm.slane %v2446, %v2638
  %v2835 = vsel %vm2640, %v2834, %v2833
  %v2836 = vperm.slane %v2447, %v2642
  %v2837 = vsel %vm2644, %v2836, %v2835
  %v2838 = vperm.slane %v2448, %v2646
  %v2839 = vsel %vm2648, %v2838, %v2837
  %v2840 = vperm.slane %v2449, %v2650
  %v2841 = vsel %vm2652, %v2840, %v2839
  %v2842 = vperm.slane %v2450, %v2654
  %v2843 = vsel %vm2656, %v2842, %v2841
  %v2844 = vperm.slane %v2451, %v2596
  %v2845 = vperm.slane %v2452, %v2598
  %v2846 = vsel %vm2600, %v2845, %v2844
  %v2847 = vperm.slane %v2453, %v2602
  %v2848 = vsel %vm2604, %v2847, %v2846
  %v2849 = vperm.slane %v2454, %v2606
  %v2850 = vsel %vm2608, %v2849, %v2848
  %v2851 = vperm.slane %v2455, %v2610
  %v2852 = vsel %vm2612, %v2851, %v2850
  %v2853 = vperm.slane %v2456, %v2614
  %v2854 = vsel %vm2616, %v2853, %v2852
  %v2855 = vperm.slane %v2457, %v2618
  %v2856 = vsel %vm2620, %v2855, %v2854
  %v2857 = vperm.slane %v2458, %v2622
  %v2858 = vsel %vm2624, %v2857, %v2856
  %v2859 = vperm.slane %v2459, %v2626
  %v2860 = vsel %vm2628, %v2859, %v2858
  %v2861 = vperm.slane %v2460, %v2630
  %v2862 = vsel %vm2632, %v2861, %v2860
  %v2863 = vperm.slane %v2461, %v2634
  %v2864 = vsel %vm2636, %v2863, %v2862
  %v2865 = vperm.slane %v2462, %v2638
  %v2866 = vsel %vm2640, %v2865, %v2864
  %v2867 = vperm.slane %v2463, %v2642
  %v2868 = vsel %vm2644, %v2867, %v2866
  %v2869 = vperm.slane %v2464, %v2646
  %v2870 = vsel %vm2648, %v2869, %v2868
  %v2871 = vperm.slane %v2465, %v2650
  %v2872 = vsel %vm2652, %v2871, %v2870
  %v2873 = vperm.slane %v2466, %v2654
  %v2874 = vsel %vm2656, %v2873, %v2872
  %vm2875 = vcmask 1041409
  %v2876 = vsel %vm2875, %v2688, %v2657
  %vm2877 = vcmask 1042434
  %v2878 = vsel %vm2877, %v2719, %v2876
  %vm2879 = vcmask 1043459
  %v2880 = vsel %vm2879, %v2750, %v2878
  %vm2881 = vcmask 1044484
  %v2882 = vsel %vm2881, %v2781, %v2880
  %vm2883 = vcmask 1045509
  %v2884 = vsel %vm2883, %v2812, %v2882
  %vm2885 = vcmask 1046534
  %v2886 = vsel %vm2885, %v2843, %v2884
  %vm2887 = vcmask 1047559
  %v2888 = vsel %vm2887, %v2874, %v2886
  %2890 = vst [vmem:[%s7] sm:$0xff] %v2888
  // Predicated region
  $region30: #{mlp_pallas.1} parent=0 // pred_check
    _
  $region31: #{mlp_pallas.1} parent=0 // pred_check_branch
    %2892 = sbr.rel (0) target = $region33
  $region32: #{mlp_pallas.1} parent=0 // pred_region
    _
  $region33: #{mlp_pallas.1} parent=0 // pred_fallthru
    _
  // Predicated region
  $region34: #{mlp_pallas.1} parent=0 // pred_check
    _
  $region35: #{mlp_pallas.1} parent=0 // pred_check_branch
    %2894 = sbr.rel (0) target = $region37
  $region36: #{mlp_pallas.1} parent=0 // pred_region
    _
  $region37: #{mlp_pallas.1} parent=0 // pred_fallthru
    _

</llo_original>
